<compile_context>
chip_gen: v5e
topology: v5e:2x2
jax: 0.10.0
libtpu: 0.0.40
codegen_flags: <defaults>
</compile_context>

<pallas_src>
import math
import functools

import jax
import jax.numpy as jnp
from jax.experimental import pallas as pl
from jax.experimental.pallas import tpu as pltpu


# ------------------------------ fused kernel ------------------------------- #

def _layernorm(x, g, b, eps=1e-12):
    mu = jnp.mean(x, axis=-1, keepdims=True)
    var = jnp.mean(jnp.square(x - mu), axis=-1, keepdims=True)
    return (x - mu) * jax.lax.rsqrt(var + eps) * g + b


def _softmax_lastdim(s):
    s = s - jnp.max(s, axis=-1, keepdims=True)
    p = jnp.exp(s)
    # EUP reciprocal; use approx=False if strict parity with PyTorch is needed.
    return p * pl.reciprocal(jnp.sum(p, axis=-1, keepdims=True), approx=True)


def _bert_fused_kernel(
        # resident activations / embedding-LN params
        emb_ref, mask_ref, eg_ref, eb_ref,
        # stacked per-layer weights, shape [L, ...] (resident in VMEM)
        wqkv_ref, bqkv_ref, wo_ref, bo_ref, g1_ref, b1_ref,
        wi_ref, bi_ref, wf_ref, bf_ref, g2_ref, b2_ref,
        # classifier head
        pw_ref, pb_ref, fc1w_ref, fc1b_ref, fc2w_ref, fc2b_ref,
        # output
        out_ref,
        *, B, S, H, nh, L):
    dh = H // nh

    # --- embedding LayerNorm ---
    x = _layernorm(emb_ref[...], eg_ref[...], eb_ref[...])          # [B*S, H]

    # Additive mask bias replicated over heads ONCE (layer-invariant):
    # [B,1,S] -> [nh*B,1,S] with head-major batch order (matches q/k/v below).
    mask = mask_ref[...]
    mask_hb = jnp.concatenate([mask] * nh, axis=0)                  # [nh*B,1,S]

    for l in range(L):            # static unroll; all layer weights already in VMEM
        # fused QKV matmul (1/sqrt(dh) pre-folded into the Q columns/bias)
        qkv = jnp.dot(x, wqkv_ref[l],
                      preferred_element_type=jnp.float32) + bqkv_ref[l]   # [B*S, 3H]

        # head-batched tensors: merge (head, batch) into one leading batch dim
        # using leading-dim concats only (no middle-dim transposes).
        def split_heads(off):
            return jnp.concatenate(
                [qkv[:, off + h * dh: off + (h + 1) * dh] for h in range(nh)],
                axis=0).reshape(nh * B, S, dh)
        q = split_heads(0)
        k = split_heads(H)
        v = split_heads(2 * H)

        s = jnp.einsum("bqd,bkd->bqk", q, k,
                       preferred_element_type=jnp.float32) + mask_hb      # [nh*B,S,S]
        p = _softmax_lastdim(s)
        ctx = jnp.einsum("bqk,bkd->bqd", p, v,
                         preferred_element_type=jnp.float32)              # [nh*B,S,dh]

        # re-pack heads onto the lane dim and do ONE output projection (K = H)
        ctx = jnp.concatenate(
            [ctx[h * B:(h + 1) * B].reshape(B * S, dh) for h in range(nh)],
            axis=-1)                                                       # [B*S, H]
        attn = jnp.dot(ctx, wo_ref[l],
                       preferred_element_type=jnp.float32) + bo_ref[l]
        x = _layernorm(attn + x, g1_ref[l], b1_ref[l])

        # --- feed-forward ---
        inter = jnp.dot(x, wi_ref[l],
                        preferred_element_type=jnp.float32) + bi_ref[l]
        # TODO(synk): HF BERT uses erf-GELU; tanh approximation kept for Mosaic-safe lowering.
        inter = jax.nn.gelu(inter, approximate=True)
        ffn = jnp.dot(inter, wf_ref[l],
                      preferred_element_type=jnp.float32) + bf_ref[l]
        x = _layernorm(ffn + x, g2_ref[l], b2_ref[l])

    # --- pooler + classifier head ---
    cls = x.reshape(B, S, H)[:, 0, :]                                # [B, H] CLS token
    pooled = jnp.tanh(jnp.dot(cls, pw_ref[...],
                              preferred_element_type=jnp.float32) + pb_ref[...])
    # TODO(synk): nn.Dropout is identity in eval mode; stochastic dropout omitted.
    hid = jnp.dot(pooled, fc1w_ref[...],
                  preferred_element_type=jnp.float32) + fc1b_ref[...]
    out_ref[...] = jnp.dot(hid, fc2w_ref[...],
                           preferred_element_type=jnp.float32) + fc2b_ref[...]


# ------------------------- parameters / model glue -------------------------- #

def init_params(key, cfg):
    H, I = cfg["hidden"], cfg["intermediate"]
    V, P = cfg["vocab"], cfg["max_pos"]
    WE, NC = cfg["word_embedding"], cfg["num_classes"]

    keys = iter(jax.random.split(key, 256))

    def w(shape):
        return jax.random.normal(next(keys), shape, jnp.float32) * 0.02

    params = {
        "word_emb": w((V, H)),
        "pos_emb": w((P, H)),
        "type_emb": w((2, H)),
        "emb_ln_g": jnp.ones((H,), jnp.float32),
        "emb_ln_b": jnp.zeros((H,), jnp.float32),
        "layers": [],
        "pool_w": w((H, H)), "pool_b": jnp.zeros((H,), jnp.float32),
        "fc1_w": w((H, WE)), "fc1_b": jnp.zeros((WE,), jnp.float32),
        "fc2_w": w((WE, NC)), "fc2_b": jnp.zeros((NC,), jnp.float32),
    }
    for _ in range(cfg["layers"]):
        params["layers"].append({
            "wq": w((H, H)), "bq": jnp.zeros((H,), jnp.float32),
            "wk": w((H, H)), "bk": jnp.zeros((H,), jnp.float32),
            "wv": w((H, H)), "bv": jnp.zeros((H,), jnp.float32),
            "wo": w((H, H)), "bo": jnp.zeros((H,), jnp.float32),
            "ln1_g": jnp.ones((H,), jnp.float32), "ln1_b": jnp.zeros((H,), jnp.float32),
            "wi": w((H, I)), "bi": jnp.zeros((I,), jnp.float32),
            "wf": w((I, H)), "bf": jnp.zeros((H,), jnp.float32),
            "ln2_g": jnp.ones((H,), jnp.float32), "ln2_b": jnp.zeros((H,), jnp.float32),
        })
    return params


def prepare_params(params, cfg):
    """One-time host-side weight packing: stack per-layer weights into [L, ...]
    arrays, fuse Wq/Wk/Wv into [L,H,3H] with 1/sqrt(dh) folded into the Q part.
    Done ONCE, not per forward call."""
    H, nh = cfg["hidden"], cfg["heads"]
    dh = H // nh
    scale = 1.0 / math.sqrt(dh)
    layers = params["layers"]

    stack = lambda k: jnp.stack([l[k] for l in layers])              # [L, a, b]
    stack_b = lambda k: jnp.stack([l[k][None, :] for l in layers])   # [L, 1, b]

    wqkv = jnp.stack([jnp.concatenate([l["wq"] * scale, l["wk"], l["wv"]], axis=1)
                      for l in layers])                              # [L, H, 3H]
    bqkv = jnp.stack([jnp.concatenate([l["bq"] * scale, l["bk"], l["bv"]])[None, :]
                      for l in layers])                              # [L, 1, 3H]

    return dict(
        word_emb=params["word_emb"], pos_emb=params["pos_emb"],
        type_emb=params["type_emb"],
        emb_ln_g=params["emb_ln_g"][None, :], emb_ln_b=params["emb_ln_b"][None, :],
        wqkv=wqkv, bqkv=bqkv,
        wo=stack("wo"), bo=stack_b("bo"),
        ln1_g=stack_b("ln1_g"), ln1_b=stack_b("ln1_b"),
        wi=stack("wi"), bi=stack_b("bi"),
        wf=stack("wf"), bf=stack_b("bf"),
        ln2_g=stack_b("ln2_g"), ln2_b=stack_b("ln2_b"),
        pool_w=params["pool_w"], pool_b=params["pool_b"][None, :],
        fc1_w=params["fc1_w"], fc1_b=params["fc1_b"][None, :],
        fc2_w=params["fc2_w"], fc2_b=params["fc2_b"][None, :],
    )


def mini_bert_forward(prepped, input_ids, attention_mask, cfg):
    B, S = input_ids.shape
    H, nh = cfg["hidden"], cfg["heads"]
    NC = cfg["num_classes"]
    L = cfg["layers"]

    # --- embeddings (gather is plain-JAX glue; LN runs inside the kernel) ---
    # TODO(synk): token_type_ids hard-coded to type 0 (reference passes none).
    emb = (prepped["word_emb"][input_ids]
           + prepped["pos_emb"][:S][None, :, :]
           + prepped["type_emb"][0][None, None, :]).reshape(B * S, H)

    # additive attention-mask bias, kept at [B, 1, S] (head-broadcast in-kernel)
    mask_bias = ((1.0 - attention_mask.astype(jnp.float32)) * -1e9)[:, None, :]

    vmem = pl.BlockSpec(memory_space=pltpu.MemorySpace.VMEM)
    kernel = functools.partial(_bert_fused_kernel, B=B, S=S, H=H, nh=nh, L=L)

    logits = pl.pallas_call(
        kernel,
        out_shape=jax.ShapeDtypeStruct((B, NC), jnp.float32),
        in_specs=[vmem] * 22,
        out_specs=vmem,
        compiler_params=pltpu.CompilerParams(
            vmem_limit_bytes=32 * 1024 * 1024),
    )(emb, mask_bias,
      prepped["emb_ln_g"], prepped["emb_ln_b"],
      prepped["wqkv"], prepped["bqkv"], prepped["wo"], prepped["bo"],
      prepped["ln1_g"], prepped["ln1_b"],
      prepped["wi"], prepped["bi"], prepped["wf"], prepped["bf"],
      prepped["ln2_g"], prepped["ln2_b"],
      prepped["pool_w"], prepped["pool_b"],
      prepped["fc1_w"], prepped["fc1_b"],
      prepped["fc2_w"], prepped["fc2_b"])
    return logits   # [B, num_classes]


# ---------------------------------- main ----------------------------------- #

if __name__ == "__main__":
    cfg = dict(vocab=64, hidden=32, heads=2, intermediate=64, max_pos=16,
               layers=2, word_embedding=16, num_classes=2)

    key = jax.random.PRNGKey(0)
    k_params, k_ids = jax.random.split(key)

    params = init_params(k_params, cfg)
    prepped = prepare_params(params, cfg)   # one-time weight packing (hoisted)

    B, S = 2, 8
    input_ids = jax.random.randint(k_ids, (B, S), 0, cfg["vocab"], dtype=jnp.int32)
    attention_mask = jnp.array([[1, 1, 1, 1, 1, 1, 1, 1],
                                [1, 1, 1, 1, 1, 1, 0, 0]], dtype=jnp.int32)

    logits = mini_bert_forward(prepped, input_ids, attention_mask, cfg)
    jax.block_until_ready(logits)
    assert logits.shape == (B, cfg["num_classes"])
    print("KERNEL_OK")
</pallas_src>

<mosaic_0001>
module attributes {stable_mosaic.version = 11 : i64} {
  func.func @_bert_fused_kernel(%arg0: memref<16x32xf32, #tpu.memory_space<vmem>>, %arg1: memref<2x1x8xf32, #tpu.memory_space<vmem>>, %arg2: memref<1x32xf32, #tpu.memory_space<vmem>>, %arg3: memref<1x32xf32, #tpu.memory_space<vmem>>, %arg4: memref<2x32x96xf32, #tpu.memory_space<vmem>>, %arg5: memref<2x1x96xf32, #tpu.memory_space<vmem>>, %arg6: memref<2x32x32xf32, #tpu.memory_space<vmem>>, %arg7: memref<2x1x32xf32, #tpu.memory_space<vmem>>, %arg8: memref<2x1x32xf32, #tpu.memory_space<vmem>>, %arg9: memref<2x1x32xf32, #tpu.memory_space<vmem>>, %arg10: memref<2x32x64xf32, #tpu.memory_space<vmem>>, %arg11: memref<2x1x64xf32, #tpu.memory_space<vmem>>, %arg12: memref<2x64x32xf32, #tpu.memory_space<vmem>>, %arg13: memref<2x1x32xf32, #tpu.memory_space<vmem>>, %arg14: memref<2x1x32xf32, #tpu.memory_space<vmem>>, %arg15: memref<2x1x32xf32, #tpu.memory_space<vmem>>, %arg16: memref<32x32xf32, #tpu.memory_space<vmem>>, %arg17: memref<1x32xf32, #tpu.memory_space<vmem>>, %arg18: memref<32x16xf32, #tpu.memory_space<vmem>>, %arg19: memref<1x16xf32, #tpu.memory_space<vmem>>, %arg20: memref<16x2xf32, #tpu.memory_space<vmem>>, %arg21: memref<1x2xf32, #tpu.memory_space<vmem>>, %arg22: memref<2x2xf32, #tpu.memory_space<vmem>>) attributes {dimension_semantics = [], scalar_prefetch = 0 : i64, scratch_operands = 0 : i64, tpu.core_type = #tpu.core_type<tc>} {
    %c0 = arith.constant 0 : index
    %c0_0 = arith.constant 0 : index
    %0 = vector.load %arg0[%c0, %c0_0] : memref<16x32xf32, #tpu.memory_space<vmem>>, vector<16x32xf32>
    %c0_1 = arith.constant 0 : index
    %c0_2 = arith.constant 0 : index
    %1 = vector.load %arg2[%c0_1, %c0_2] : memref<1x32xf32, #tpu.memory_space<vmem>>, vector<1x32xf32>
    %c0_3 = arith.constant 0 : index
    %c0_4 = arith.constant 0 : index
    %2 = vector.load %arg3[%c0_3, %c0_4] : memref<1x32xf32, #tpu.memory_space<vmem>>, vector<1x32xf32>
    %cst = arith.constant dense<0.000000e+00> : vector<16xf32>
    %3 = vector.multi_reduction <add>, %0, %cst [1] : vector<16x32xf32> to vector<16xf32>
    %4 = vector.shape_cast %3 : vector<16xf32> to vector<16x1xf32>
    %cst_5 = arith.constant 3.200000e+01 : f32
    %5 = vector.broadcast %cst_5 : f32 to vector<16x1xf32>
    %6 = arith.divf %4, %5 : vector<16x1xf32>
    %7 = vector.broadcast %6 : vector<16x1xf32> to vector<16x32xf32>
    %8 = arith.subf %0, %7 : vector<16x32xf32>
    %9 = arith.mulf %8, %8 : vector<16x32xf32>
    %cst_6 = arith.constant dense<0.000000e+00> : vector<16xf32>
    %10 = vector.multi_reduction <add>, %9, %cst_6 [1] : vector<16x32xf32> to vector<16xf32>
    %11 = vector.shape_cast %10 : vector<16xf32> to vector<16x1xf32>
    %cst_7 = arith.constant 3.200000e+01 : f32
    %12 = vector.broadcast %cst_7 : f32 to vector<16x1xf32>
    %13 = arith.divf %11, %12 : vector<16x1xf32>
    %14 = vector.broadcast %6 : vector<16x1xf32> to vector<16x32xf32>
    %15 = arith.subf %0, %14 : vector<16x32xf32>
    %cst_8 = arith.constant 9.99999996E-13 : f32
    %16 = vector.broadcast %cst_8 : f32 to vector<16x1xf32>
    %17 = arith.addf %13, %16 : vector<16x1xf32>
    %18 = math.rsqrt %17 : vector<16x1xf32>
    %19 = vector.broadcast %18 : vector<16x1xf32> to vector<16x32xf32>
    %20 = arith.mulf %15, %19 : vector<16x32xf32>
    %21 = vector.broadcast %1 : vector<1x32xf32> to vector<16x32xf32>
    %22 = arith.mulf %20, %21 : vector<16x32xf32>
    %23 = vector.broadcast %2 : vector<1x32xf32> to vector<16x32xf32>
    %24 = arith.addf %22, %23 : vector<16x32xf32>
    %c0_9 = arith.constant 0 : index
    %c0_10 = arith.constant 0 : index
    %c0_11 = arith.constant 0 : index
    %25 = vector.load %arg1[%c0_9, %c0_10, %c0_11] : memref<2x1x8xf32, #tpu.memory_space<vmem>>, vector<2x1x8xf32>
    %26 = tpu.concatenate %25, %25 in 0 : vector<2x1x8xf32>, vector<2x1x8xf32> -> vector<4x1x8xf32>
    %c0_12 = arith.constant 0 : index
    %c0_13 = arith.constant 0 : index
    %c0_14 = arith.constant 0 : index
    %27 = vector.load %arg4[%c0_12, %c0_13, %c0_14] : memref<2x32x96xf32, #tpu.memory_space<vmem>>, vector<1x32x96xf32>
    %28 = vector.shape_cast %27 : vector<1x32x96xf32> to vector<32x96xf32>
    %cst_15 = arith.constant dense<0.000000e+00> : vector<16x96xf32>
    %29 = tpu.matmul %24, %28, %cst_15 {dimension_numbers = #tpu.dot_dimension_numbers<[1], [0], [0], [1], [0, 0, 1, 1], [], []>} : vector<16x32xf32>, vector<32x96xf32>, vector<16x96xf32> -> vector<16x96xf32>
    %c0_16 = arith.constant 0 : index
    %c0_17 = arith.constant 0 : index
    %c0_18 = arith.constant 0 : index
    %30 = vector.load %arg5[%c0_16, %c0_17, %c0_18] : memref<2x1x96xf32, #tpu.memory_space<vmem>>, vector<1x1x96xf32>
    %31 = vector.shape_cast %30 : vector<1x1x96xf32> to vector<1x96xf32>
    %32 = vector.broadcast %31 : vector<1x96xf32> to vector<16x96xf32>
    %33 = arith.addf %29, %32 : vector<16x96xf32>
    %34 = vector.extract_strided_slice %33 {offsets = [0, 0], sizes = [16, 16], strides = [1, 1]} : vector<16x96xf32> to vector<16x16xf32>
    %35 = vector.extract_strided_slice %33 {offsets = [0, 16], sizes = [16, 16], strides = [1, 1]} : vector<16x96xf32> to vector<16x16xf32>
    %36 = tpu.concatenate %34, %35 in 0 : vector<16x16xf32>, vector<16x16xf32> -> vector<32x16xf32>
    %37 = vector.shape_cast %36 : vector<32x16xf32> to vector<4x8x16xf32>
    %38 = vector.extract_strided_slice %33 {offsets = [0, 32], sizes = [16, 16], strides = [1, 1]} : vector<16x96xf32> to vector<16x16xf32>
    %39 = vector.extract_strided_slice %33 {offsets = [0, 48], sizes = [16, 16], strides = [1, 1]} : vector<16x96xf32> to vector<16x16xf32>
    %40 = tpu.concatenate %38, %39 in 0 : vector<16x16xf32>, vector<16x16xf32> -> vector<32x16xf32>
    %41 = vector.shape_cast %40 : vector<32x16xf32> to vector<4x8x16xf32>
    %42 = vector.extract_strided_slice %33 {offsets = [0, 64], sizes = [16, 16], strides = [1, 1]} : vector<16x96xf32> to vector<16x16xf32>
    %43 = vector.extract_strided_slice %33 {offsets = [0, 80], sizes = [16, 16], strides = [1, 1]} : vector<16x96xf32> to vector<16x16xf32>
    %44 = tpu.concatenate %42, %43 in 0 : vector<16x16xf32>, vector<16x16xf32> -> vector<32x16xf32>
    %45 = vector.shape_cast %44 : vector<32x16xf32> to vector<4x8x16xf32>
    "tpu.trace_start"() <{level = 10 : i32, message = "bqd,bkd->bqk"}> : () -> ()
    %cst_19 = arith.constant dense<0.000000e+00> : vector<4x8x8xf32>
    %46 = tpu.matmul %37, %41, %cst_19 {dimension_numbers = #tpu.dot_dimension_numbers<[2], [2], [1], [1], [0, 0, 0, 1, 1, 1], [0], [0]>} : vector<4x8x16xf32>, vector<4x8x16xf32>, vector<4x8x8xf32> -> vector<4x8x8xf32>
    "tpu.trace_stop"() : () -> ()
    %47 = vector.broadcast %26 : vector<4x1x8xf32> to vector<4x8x8xf32>
    %48 = arith.addf %46, %47 : vector<4x8x8xf32>
    %cst_20 = arith.constant dense<0xFF800000> : vector<4x8xf32>
    %49 = vector.multi_reduction <maximumf>, %48, %cst_20 [2] : vector<4x8x8xf32> to vector<4x8xf32>
    %50 = vector.shape_cast %49 : vector<4x8xf32> to vector<4x8x1xf32>
    %51 = vector.broadcast %50 : vector<4x8x1xf32> to vector<4x8x8xf32>
    %52 = arith.subf %48, %51 : vector<4x8x8xf32>
    %53 = math.exp %52 : vector<4x8x8xf32>
    %cst_21 = arith.constant dense<0.000000e+00> : vector<4x8xf32>
    %54 = vector.multi_reduction <add>, %53, %cst_21 [2] : vector<4x8x8xf32> to vector<4x8xf32>
    %55 = vector.shape_cast %54 : vector<4x8xf32> to vector<4x8x1xf32>
    %56 = tpu.reciprocal %55 {approx = true} : vector<4x8x1xf32> -> vector<4x8x1xf32>
    %57 = vector.broadcast %56 : vector<4x8x1xf32> to vector<4x8x8xf32>
    %58 = arith.mulf %53, %57 : vector<4x8x8xf32>
    "tpu.trace_start"() <{level = 10 : i32, message = "bqk,bkd->bqd"}> : () -> ()
    %cst_22 = arith.constant dense<0.000000e+00> : vector<4x8x16xf32>
    %59 = tpu.matmul %58, %45, %cst_22 {dimension_numbers = #tpu.dot_dimension_numbers<[2], [1], [1], [2], [0, 0, 0, 1, 1, 2], [0], [0]>} : vector<4x8x8xf32>, vector<4x8x16xf32>, vector<4x8x16xf32> -> vector<4x8x16xf32>
    "tpu.trace_stop"() : () -> ()
    %60 = vector.extract_strided_slice %59 {offsets = [0, 0, 0], sizes = [2, 8, 16], strides = [1, 1, 1]} : vector<4x8x16xf32> to vector<2x8x16xf32>
    %61 = vector.shape_cast %60 : vector<2x8x16xf32> to vector<16x16xf32>
    %62 = vector.extract_strided_slice %59 {offsets = [2, 0, 0], sizes = [2, 8, 16], strides = [1, 1, 1]} : vector<4x8x16xf32> to vector<2x8x16xf32>
    %63 = vector.shape_cast %62 : vector<2x8x16xf32> to vector<16x16xf32>
    %64 = tpu.concatenate %61, %63 in 1 : vector<16x16xf32>, vector<16x16xf32> -> vector<16x32xf32>
    %c0_23 = arith.constant 0 : index
    %c0_24 = arith.constant 0 : index
    %c0_25 = arith.constant 0 : index
    %65 = vector.load %arg6[%c0_23, %c0_24, %c0_25] : memref<2x32x32xf32, #tpu.memory_space<vmem>>, vector<1x32x32xf32>
    %66 = vector.shape_cast %65 : vector<1x32x32xf32> to vector<32x32xf32>
    %cst_26 = arith.constant dense<0.000000e+00> : vector<16x32xf32>
    %67 = tpu.matmul %64, %66, %cst_26 {dimension_numbers = #tpu.dot_dimension_numbers<[1], [0], [0], [1], [0, 0, 1, 1], [], []>} : vector<16x32xf32>, vector<32x32xf32>, vector<16x32xf32> -> vector<16x32xf32>
    %c0_27 = arith.constant 0 : index
    %c0_28 = arith.constant 0 : index
    %c0_29 = arith.constant 0 : index
    %68 = vector.load %arg7[%c0_27, %c0_28, %c0_29] : memref<2x1x32xf32, #tpu.memory_space<vmem>>, vector<1x1x32xf32>
    %69 = vector.shape_cast %68 : vector<1x1x32xf32> to vector<1x32xf32>
    %70 = vector.broadcast %69 : vector<1x32xf32> to vector<16x32xf32>
    %71 = arith.addf %67, %70 : vector<16x32xf32>
    %72 = arith.addf %71, %24 : vector<16x32xf32>
    %c0_30 = arith.constant 0 : index
    %c0_31 = arith.constant 0 : index
    %c0_32 = arith.constant 0 : index
    %73 = vector.load %arg8[%c0_30, %c0_31, %c0_32] : memref<2x1x32xf32, #tpu.memory_space<vmem>>, vector<1x1x32xf32>
    %74 = vector.shape_cast %73 : vector<1x1x32xf32> to vector<1x32xf32>
    %c0_33 = arith.constant 0 : index
    %c0_34 = arith.constant 0 : index
    %c0_35 = arith.constant 0 : index
    %75 = vector.load %arg9[%c0_33, %c0_34, %c0_35] : memref<2x1x32xf32, #tpu.memory_space<vmem>>, vector<1x1x32xf32>
    %76 = vector.shape_cast %75 : vector<1x1x32xf32> to vector<1x32xf32>
    %cst_36 = arith.constant dense<0.000000e+00> : vector<16xf32>
    %77 = vector.multi_reduction <add>, %72, %cst_36 [1] : vector<16x32xf32> to vector<16xf32>
    %78 = vector.shape_cast %77 : vector<16xf32> to vector<16x1xf32>
    %cst_37 = arith.constant 3.200000e+01 : f32
    %79 = vector.broadcast %cst_37 : f32 to vector<16x1xf32>
    %80 = arith.divf %78, %79 : vector<16x1xf32>
    %81 = vector.broadcast %80 : vector<16x1xf32> to vector<16x32xf32>
    %82 = arith.subf %72, %81 : vector<16x32xf32>
    %83 = arith.mulf %82, %82 : vector<16x32xf32>
    %cst_38 = arith.constant dense<0.000000e+00> : vector<16xf32>
    %84 = vector.multi_reduction <add>, %83, %cst_38 [1] : vector<16x32xf32> to vector<16xf32>
    %85 = vector.shape_cast %84 : vector<16xf32> to vector<16x1xf32>
    %cst_39 = arith.constant 3.200000e+01 : f32
    %86 = vector.broadcast %cst_39 : f32 to vector<16x1xf32>
    %87 = arith.divf %85, %86 : vector<16x1xf32>
    %88 = vector.broadcast %80 : vector<16x1xf32> to vector<16x32xf32>
    %89 = arith.subf %72, %88 : vector<16x32xf32>
    %cst_40 = arith.constant 9.99999996E-13 : f32
    %90 = vector.broadcast %cst_40 : f32 to vector<16x1xf32>
    %91 = arith.addf %87, %90 : vector<16x1xf32>
    %92 = math.rsqrt %91 : vector<16x1xf32>
    %93 = vector.broadcast %92 : vector<16x1xf32> to vector<16x32xf32>
    %94 = arith.mulf %89, %93 : vector<16x32xf32>
    %95 = vector.broadcast %74 : vector<1x32xf32> to vector<16x32xf32>
    %96 = arith.mulf %94, %95 : vector<16x32xf32>
    %97 = vector.broadcast %76 : vector<1x32xf32> to vector<16x32xf32>
    %98 = arith.addf %96, %97 : vector<16x32xf32>
    %c0_41 = arith.constant 0 : index
    %c0_42 = arith.constant 0 : index
    %c0_43 = arith.constant 0 : index
    %99 = vector.load %arg10[%c0_41, %c0_42, %c0_43] : memref<2x32x64xf32, #tpu.memory_space<vmem>>, vector<1x32x64xf32>
    %100 = vector.shape_cast %99 : vector<1x32x64xf32> to vector<32x64xf32>
    %cst_44 = arith.constant dense<0.000000e+00> : vector<16x64xf32>
    %101 = tpu.matmul %98, %100, %cst_44 {dimension_numbers = #tpu.dot_dimension_numbers<[1], [0], [0], [1], [0, 0, 1, 1], [], []>} : vector<16x32xf32>, vector<32x64xf32>, vector<16x64xf32> -> vector<16x64xf32>
    %c0_45 = arith.constant 0 : index
    %c0_46 = arith.constant 0 : index
    %c0_47 = arith.constant 0 : index
    %102 = vector.load %arg11[%c0_45, %c0_46, %c0_47] : memref<2x1x64xf32, #tpu.memory_space<vmem>>, vector<1x1x64xf32>
    %103 = vector.shape_cast %102 : vector<1x1x64xf32> to vector<1x64xf32>
    %104 = vector.broadcast %103 : vector<1x64xf32> to vector<16x64xf32>
    %105 = arith.addf %101, %104 : vector<16x64xf32>
    %106 = arith.mulf %105, %105 : vector<16x64xf32>
    %107 = arith.mulf %105, %106 : vector<16x64xf32>
    %cst_48 = arith.constant 4.471500e-02 : f32
    %108 = vector.broadcast %cst_48 : f32 to vector<16x64xf32>
    %109 = arith.mulf %108, %107 : vector<16x64xf32>
    %110 = arith.addf %105, %109 : vector<16x64xf32>
    %cst_49 = arith.constant 0.797884583 : f32
    %111 = vector.broadcast %cst_49 : f32 to vector<16x64xf32>
    %112 = arith.mulf %111, %110 : vector<16x64xf32>
    %113 = math.tanh %112 : vector<16x64xf32>
    %cst_50 = arith.constant 1.000000e+00 : f32
    %114 = vector.broadcast %cst_50 : f32 to vector<16x64xf32>
    %115 = arith.addf %114, %113 : vector<16x64xf32>
    %cst_51 = arith.constant 5.000000e-01 : f32
    %116 = vector.broadcast %cst_51 : f32 to vector<16x64xf32>
    %117 = arith.mulf %116, %115 : vector<16x64xf32>
    %118 = arith.mulf %105, %117 : vector<16x64xf32>
    %c0_52 = arith.constant 0 : index
    %c0_53 = arith.constant 0 : index
    %c0_54 = arith.constant 0 : index
    %119 = vector.load %arg12[%c0_52, %c0_53, %c0_54] : memref<2x64x32xf32, #tpu.memory_space<vmem>>, vector<1x64x32xf32>
    %120 = vector.shape_cast %119 : vector<1x64x32xf32> to vector<64x32xf32>
    %cst_55 = arith.constant dense<0.000000e+00> : vector<16x32xf32>
    %121 = tpu.matmul %118, %120, %cst_55 {dimension_numbers = #tpu.dot_dimension_numbers<[1], [0], [0], [1], [0, 0, 1, 1], [], []>} : vector<16x64xf32>, vector<64x32xf32>, vector<16x32xf32> -> vector<16x32xf32>
    %c0_56 = arith.constant 0 : index
    %c0_57 = arith.constant 0 : index
    %c0_58 = arith.constant 0 : index
    %122 = vector.load %arg13[%c0_56, %c0_57, %c0_58] : memref<2x1x32xf32, #tpu.memory_space<vmem>>, vector<1x1x32xf32>
    %123 = vector.shape_cast %122 : vector<1x1x32xf32> to vector<1x32xf32>
    %124 = vector.broadcast %123 : vector<1x32xf32> to vector<16x32xf32>
    %125 = arith.addf %121, %124 : vector<16x32xf32>
    %126 = arith.addf %125, %98 : vector<16x32xf32>
    %c0_59 = arith.constant 0 : index
    %c0_60 = arith.constant 0 : index
    %c0_61 = arith.constant 0 : index
    %127 = vector.load %arg14[%c0_59, %c0_60, %c0_61] : memref<2x1x32xf32, #tpu.memory_space<vmem>>, vector<1x1x32xf32>
    %128 = vector.shape_cast %127 : vector<1x1x32xf32> to vector<1x32xf32>
    %c0_62 = arith.constant 0 : index
    %c0_63 = arith.constant 0 : index
    %c0_64 = arith.constant 0 : index
    %129 = vector.load %arg15[%c0_62, %c0_63, %c0_64] : memref<2x1x32xf32, #tpu.memory_space<vmem>>, vector<1x1x32xf32>
    %130 = vector.shape_cast %129 : vector<1x1x32xf32> to vector<1x32xf32>
    %cst_65 = arith.constant dense<0.000000e+00> : vector<16xf32>
    %131 = vector.multi_reduction <add>, %126, %cst_65 [1] : vector<16x32xf32> to vector<16xf32>
    %132 = vector.shape_cast %131 : vector<16xf32> to vector<16x1xf32>
    %cst_66 = arith.constant 3.200000e+01 : f32
    %133 = vector.broadcast %cst_66 : f32 to vector<16x1xf32>
    %134 = arith.divf %132, %133 : vector<16x1xf32>
    %135 = vector.broadcast %134 : vector<16x1xf32> to vector<16x32xf32>
    %136 = arith.subf %126, %135 : vector<16x32xf32>
    %137 = arith.mulf %136, %136 : vector<16x32xf32>
    %cst_67 = arith.constant dense<0.000000e+00> : vector<16xf32>
    %138 = vector.multi_reduction <add>, %137, %cst_67 [1] : vector<16x32xf32> to vector<16xf32>
    %139 = vector.shape_cast %138 : vector<16xf32> to vector<16x1xf32>
    %cst_68 = arith.constant 3.200000e+01 : f32
    %140 = vector.broadcast %cst_68 : f32 to vector<16x1xf32>
    %141 = arith.divf %139, %140 : vector<16x1xf32>
    %142 = vector.broadcast %134 : vector<16x1xf32> to vector<16x32xf32>
    %143 = arith.subf %126, %142 : vector<16x32xf32>
    %cst_69 = arith.constant 9.99999996E-13 : f32
    %144 = vector.broadcast %cst_69 : f32 to vector<16x1xf32>
    %145 = arith.addf %141, %144 : vector<16x1xf32>
    %146 = math.rsqrt %145 : vector<16x1xf32>
    %147 = vector.broadcast %146 : vector<16x1xf32> to vector<16x32xf32>
    %148 = arith.mulf %143, %147 : vector<16x32xf32>
    %149 = vector.broadcast %128 : vector<1x32xf32> to vector<16x32xf32>
    %150 = arith.mulf %148, %149 : vector<16x32xf32>
    %151 = vector.broadcast %130 : vector<1x32xf32> to vector<16x32xf32>
    %152 = arith.addf %150, %151 : vector<16x32xf32>
    %c1 = arith.constant 1 : index
    %c0_70 = arith.constant 0 : index
    %c0_71 = arith.constant 0 : index
    %153 = vector.load %arg4[%c1, %c0_70, %c0_71] : memref<2x32x96xf32, #tpu.memory_space<vmem>>, vector<1x32x96xf32>
    %154 = vector.shape_cast %153 : vector<1x32x96xf32> to vector<32x96xf32>
    %cst_72 = arith.constant dense<0.000000e+00> : vector<16x96xf32>
    %155 = tpu.matmul %152, %154, %cst_72 {dimension_numbers = #tpu.dot_dimension_numbers<[1], [0], [0], [1], [0, 0, 1, 1], [], []>} : vector<16x32xf32>, vector<32x96xf32>, vector<16x96xf32> -> vector<16x96xf32>
    %c1_73 = arith.constant 1 : index
    %c0_74 = arith.constant 0 : index
    %c0_75 = arith.constant 0 : index
    %156 = vector.load %arg5[%c1_73, %c0_74, %c0_75] : memref<2x1x96xf32, #tpu.memory_space<vmem>>, vector<1x1x96xf32>
    %157 = vector.shape_cast %156 : vector<1x1x96xf32> to vector<1x96xf32>
    %158 = vector.broadcast %157 : vector<1x96xf32> to vector<16x96xf32>
    %159 = arith.addf %155, %158 : vector<16x96xf32>
    %160 = vector.extract_strided_slice %159 {offsets = [0, 0], sizes = [16, 16], strides = [1, 1]} : vector<16x96xf32> to vector<16x16xf32>
    %161 = vector.extract_strided_slice %159 {offsets = [0, 16], sizes = [16, 16], strides = [1, 1]} : vector<16x96xf32> to vector<16x16xf32>
    %162 = tpu.concatenate %160, %161 in 0 : vector<16x16xf32>, vector<16x16xf32> -> vector<32x16xf32>
    %163 = vector.shape_cast %162 : vector<32x16xf32> to vector<4x8x16xf32>
    %164 = vector.extract_strided_slice %159 {offsets = [0, 32], sizes = [16, 16], strides = [1, 1]} : vector<16x96xf32> to vector<16x16xf32>
    %165 = vector.extract_strided_slice %159 {offsets = [0, 48], sizes = [16, 16], strides = [1, 1]} : vector<16x96xf32> to vector<16x16xf32>
    %166 = tpu.concatenate %164, %165 in 0 : vector<16x16xf32>, vector<16x16xf32> -> vector<32x16xf32>
    %167 = vector.shape_cast %166 : vector<32x16xf32> to vector<4x8x16xf32>
    %168 = vector.extract_strided_slice %159 {offsets = [0, 64], sizes = [16, 16], strides = [1, 1]} : vector<16x96xf32> to vector<16x16xf32>
    %169 = vector.extract_strided_slice %159 {offsets = [0, 80], sizes = [16, 16], strides = [1, 1]} : vector<16x96xf32> to vector<16x16xf32>
    %170 = tpu.concatenate %168, %169 in 0 : vector<16x16xf32>, vector<16x16xf32> -> vector<32x16xf32>
    %171 = vector.shape_cast %170 : vector<32x16xf32> to vector<4x8x16xf32>
    "tpu.trace_start"() <{level = 10 : i32, message = "bqd,bkd->bqk"}> : () -> ()
    %cst_76 = arith.constant dense<0.000000e+00> : vector<4x8x8xf32>
    %172 = tpu.matmul %163, %167, %cst_76 {dimension_numbers = #tpu.dot_dimension_numbers<[2], [2], [1], [1], [0, 0, 0, 1, 1, 1], [0], [0]>} : vector<4x8x16xf32>, vector<4x8x16xf32>, vector<4x8x8xf32> -> vector<4x8x8xf32>
    "tpu.trace_stop"() : () -> ()
    %173 = vector.broadcast %26 : vector<4x1x8xf32> to vector<4x8x8xf32>
    %174 = arith.addf %172, %173 : vector<4x8x8xf32>
    %cst_77 = arith.constant dense<0xFF800000> : vector<4x8xf32>
    %175 = vector.multi_reduction <maximumf>, %174, %cst_77 [2] : vector<4x8x8xf32> to vector<4x8xf32>
    %176 = vector.shape_cast %175 : vector<4x8xf32> to vector<4x8x1xf32>
    %177 = vector.broadcast %176 : vector<4x8x1xf32> to vector<4x8x8xf32>
    %178 = arith.subf %174, %177 : vector<4x8x8xf32>
    %179 = math.exp %178 : vector<4x8x8xf32>
    %cst_78 = arith.constant dense<0.000000e+00> : vector<4x8xf32>
    %180 = vector.multi_reduction <add>, %179, %cst_78 [2] : vector<4x8x8xf32> to vector<4x8xf32>
    %181 = vector.shape_cast %180 : vector<4x8xf32> to vector<4x8x1xf32>
    %182 = tpu.reciprocal %181 {approx = true} : vector<4x8x1xf32> -> vector<4x8x1xf32>
    %183 = vector.broadcast %182 : vector<4x8x1xf32> to vector<4x8x8xf32>
    %184 = arith.mulf %179, %183 : vector<4x8x8xf32>
    "tpu.trace_start"() <{level = 10 : i32, message = "bqk,bkd->bqd"}> : () -> ()
    %cst_79 = arith.constant dense<0.000000e+00> : vector<4x8x16xf32>
    %185 = tpu.matmul %184, %171, %cst_79 {dimension_numbers = #tpu.dot_dimension_numbers<[2], [1], [1], [2], [0, 0, 0, 1, 1, 2], [0], [0]>} : vector<4x8x8xf32>, vector<4x8x16xf32>, vector<4x8x16xf32> -> vector<4x8x16xf32>
    "tpu.trace_stop"() : () -> ()
    %186 = vector.extract_strided_slice %185 {offsets = [0, 0, 0], sizes = [2, 8, 16], strides = [1, 1, 1]} : vector<4x8x16xf32> to vector<2x8x16xf32>
    %187 = vector.shape_cast %186 : vector<2x8x16xf32> to vector<16x16xf32>
    %188 = vector.extract_strided_slice %185 {offsets = [2, 0, 0], sizes = [2, 8, 16], strides = [1, 1, 1]} : vector<4x8x16xf32> to vector<2x8x16xf32>
    %189 = vector.shape_cast %188 : vector<2x8x16xf32> to vector<16x16xf32>
    %190 = tpu.concatenate %187, %189 in 1 : vector<16x16xf32>, vector<16x16xf32> -> vector<16x32xf32>
    %c1_80 = arith.constant 1 : index
    %c0_81 = arith.constant 0 : index
    %c0_82 = arith.constant 0 : index
    %191 = vector.load %arg6[%c1_80, %c0_81, %c0_82] : memref<2x32x32xf32, #tpu.memory_space<vmem>>, vector<1x32x32xf32>
    %192 = vector.shape_cast %191 : vector<1x32x32xf32> to vector<32x32xf32>
    %cst_83 = arith.constant dense<0.000000e+00> : vector<16x32xf32>
    %193 = tpu.matmul %190, %192, %cst_83 {dimension_numbers = #tpu.dot_dimension_numbers<[1], [0], [0], [1], [0, 0, 1, 1], [], []>} : vector<16x32xf32>, vector<32x32xf32>, vector<16x32xf32> -> vector<16x32xf32>
    %c1_84 = arith.constant 1 : index
    %c0_85 = arith.constant 0 : index
    %c0_86 = arith.constant 0 : index
    %194 = vector.load %arg7[%c1_84, %c0_85, %c0_86] : memref<2x1x32xf32, #tpu.memory_space<vmem>>, vector<1x1x32xf32>
    %195 = vector.shape_cast %194 : vector<1x1x32xf32> to vector<1x32xf32>
    %196 = vector.broadcast %195 : vector<1x32xf32> to vector<16x32xf32>
    %197 = arith.addf %193, %196 : vector<16x32xf32>
    %198 = arith.addf %197, %152 : vector<16x32xf32>
    %c1_87 = arith.constant 1 : index
    %c0_88 = arith.constant 0 : index
    %c0_89 = arith.constant 0 : index
    %199 = vector.load %arg8[%c1_87, %c0_88, %c0_89] : memref<2x1x32xf32, #tpu.memory_space<vmem>>, vector<1x1x32xf32>
    %200 = vector.shape_cast %199 : vector<1x1x32xf32> to vector<1x32xf32>
    %c1_90 = arith.constant 1 : index
    %c0_91 = arith.constant 0 : index
    %c0_92 = arith.constant 0 : index
    %201 = vector.load %arg9[%c1_90, %c0_91, %c0_92] : memref<2x1x32xf32, #tpu.memory_space<vmem>>, vector<1x1x32xf32>
    %202 = vector.shape_cast %201 : vector<1x1x32xf32> to vector<1x32xf32>
    %cst_93 = arith.constant dense<0.000000e+00> : vector<16xf32>
    %203 = vector.multi_reduction <add>, %198, %cst_93 [1] : vector<16x32xf32> to vector<16xf32>
    %204 = vector.shape_cast %203 : vector<16xf32> to vector<16x1xf32>
    %cst_94 = arith.constant 3.200000e+01 : f32
    %205 = vector.broadcast %cst_94 : f32 to vector<16x1xf32>
    %206 = arith.divf %204, %205 : vector<16x1xf32>
    %207 = vector.broadcast %206 : vector<16x1xf32> to vector<16x32xf32>
    %208 = arith.subf %198, %207 : vector<16x32xf32>
    %209 = arith.mulf %208, %208 : vector<16x32xf32>
    %cst_95 = arith.constant dense<0.000000e+00> : vector<16xf32>
    %210 = vector.multi_reduction <add>, %209, %cst_95 [1] : vector<16x32xf32> to vector<16xf32>
    %211 = vector.shape_cast %210 : vector<16xf32> to vector<16x1xf32>
    %cst_96 = arith.constant 3.200000e+01 : f32
    %212 = vector.broadcast %cst_96 : f32 to vector<16x1xf32>
    %213 = arith.divf %211, %212 : vector<16x1xf32>
    %214 = vector.broadcast %206 : vector<16x1xf32> to vector<16x32xf32>
    %215 = arith.subf %198, %214 : vector<16x32xf32>
    %cst_97 = arith.constant 9.99999996E-13 : f32
    %216 = vector.broadcast %cst_97 : f32 to vector<16x1xf32>
    %217 = arith.addf %213, %216 : vector<16x1xf32>
    %218 = math.rsqrt %217 : vector<16x1xf32>
    %219 = vector.broadcast %218 : vector<16x1xf32> to vector<16x32xf32>
    %220 = arith.mulf %215, %219 : vector<16x32xf32>
    %221 = vector.broadcast %200 : vector<1x32xf32> to vector<16x32xf32>
    %222 = arith.mulf %220, %221 : vector<16x32xf32>
    %223 = vector.broadcast %202 : vector<1x32xf32> to vector<16x32xf32>
    %224 = arith.addf %222, %223 : vector<16x32xf32>
    %c1_98 = arith.constant 1 : index
    %c0_99 = arith.constant 0 : index
    %c0_100 = arith.constant 0 : index
    %225 = vector.load %arg10[%c1_98, %c0_99, %c0_100] : memref<2x32x64xf32, #tpu.memory_space<vmem>>, vector<1x32x64xf32>
    %226 = vector.shape_cast %225 : vector<1x32x64xf32> to vector<32x64xf32>
    %cst_101 = arith.constant dense<0.000000e+00> : vector<16x64xf32>
    %227 = tpu.matmul %224, %226, %cst_101 {dimension_numbers = #tpu.dot_dimension_numbers<[1], [0], [0], [1], [0, 0, 1, 1], [], []>} : vector<16x32xf32>, vector<32x64xf32>, vector<16x64xf32> -> vector<16x64xf32>
    %c1_102 = arith.constant 1 : index
    %c0_103 = arith.constant 0 : index
    %c0_104 = arith.constant 0 : index
    %228 = vector.load %arg11[%c1_102, %c0_103, %c0_104] : memref<2x1x64xf32, #tpu.memory_space<vmem>>, vector<1x1x64xf32>
    %229 = vector.shape_cast %228 : vector<1x1x64xf32> to vector<1x64xf32>
    %230 = vector.broadcast %229 : vector<1x64xf32> to vector<16x64xf32>
    %231 = arith.addf %227, %230 : vector<16x64xf32>
    %232 = arith.mulf %231, %231 : vector<16x64xf32>
    %233 = arith.mulf %231, %232 : vector<16x64xf32>
    %cst_105 = arith.constant 4.471500e-02 : f32
    %234 = vector.broadcast %cst_105 : f32 to vector<16x64xf32>
    %235 = arith.mulf %234, %233 : vector<16x64xf32>
    %236 = arith.addf %231, %235 : vector<16x64xf32>
    %cst_106 = arith.constant 0.797884583 : f32
    %237 = vector.broadcast %cst_106 : f32 to vector<16x64xf32>
    %238 = arith.mulf %237, %236 : vector<16x64xf32>
    %239 = math.tanh %238 : vector<16x64xf32>
    %cst_107 = arith.constant 1.000000e+00 : f32
    %240 = vector.broadcast %cst_107 : f32 to vector<16x64xf32>
    %241 = arith.addf %240, %239 : vector<16x64xf32>
    %cst_108 = arith.constant 5.000000e-01 : f32
    %242 = vector.broadcast %cst_108 : f32 to vector<16x64xf32>
    %243 = arith.mulf %242, %241 : vector<16x64xf32>
    %244 = arith.mulf %231, %243 : vector<16x64xf32>
    %c1_109 = arith.constant 1 : index
    %c0_110 = arith.constant 0 : index
    %c0_111 = arith.constant 0 : index
    %245 = vector.load %arg12[%c1_109, %c0_110, %c0_111] : memref<2x64x32xf32, #tpu.memory_space<vmem>>, vector<1x64x32xf32>
    %246 = vector.shape_cast %245 : vector<1x64x32xf32> to vector<64x32xf32>
    %cst_112 = arith.constant dense<0.000000e+00> : vector<16x32xf32>
    %247 = tpu.matmul %244, %246, %cst_112 {dimension_numbers = #tpu.dot_dimension_numbers<[1], [0], [0], [1], [0, 0, 1, 1], [], []>} : vector<16x64xf32>, vector<64x32xf32>, vector<16x32xf32> -> vector<16x32xf32>
    %c1_113 = arith.constant 1 : index
    %c0_114 = arith.constant 0 : index
    %c0_115 = arith.constant 0 : index
    %248 = vector.load %arg13[%c1_113, %c0_114, %c0_115] : memref<2x1x32xf32, #tpu.memory_space<vmem>>, vector<1x1x32xf32>
    %249 = vector.shape_cast %248 : vector<1x1x32xf32> to vector<1x32xf32>
    %250 = vector.broadcast %249 : vector<1x32xf32> to vector<16x32xf32>
    %251 = arith.addf %247, %250 : vector<16x32xf32>
    %252 = arith.addf %251, %224 : vector<16x32xf32>
    %c1_116 = arith.constant 1 : index
    %c0_117 = arith.constant 0 : index
    %c0_118 = arith.constant 0 : index
    %253 = vector.load %arg14[%c1_116, %c0_117, %c0_118] : memref<2x1x32xf32, #tpu.memory_space<vmem>>, vector<1x1x32xf32>
    %254 = vector.shape_cast %253 : vector<1x1x32xf32> to vector<1x32xf32>
    %c1_119 = arith.constant 1 : index
    %c0_120 = arith.constant 0 : index
    %c0_121 = arith.constant 0 : index
    %255 = vector.load %arg15[%c1_119, %c0_120, %c0_121] : memref<2x1x32xf32, #tpu.memory_space<vmem>>, vector<1x1x32xf32>
    %256 = vector.shape_cast %255 : vector<1x1x32xf32> to vector<1x32xf32>
    %cst_122 = arith.constant dense<0.000000e+00> : vector<16xf32>
    %257 = vector.multi_reduction <add>, %252, %cst_122 [1] : vector<16x32xf32> to vector<16xf32>
    %258 = vector.shape_cast %257 : vector<16xf32> to vector<16x1xf32>
    %cst_123 = arith.constant 3.200000e+01 : f32
    %259 = vector.broadcast %cst_123 : f32 to vector<16x1xf32>
    %260 = arith.divf %258, %259 : vector<16x1xf32>
    %261 = vector.broadcast %260 : vector<16x1xf32> to vector<16x32xf32>
    %262 = arith.subf %252, %261 : vector<16x32xf32>
    %263 = arith.mulf %262, %262 : vector<16x32xf32>
    %cst_124 = arith.constant dense<0.000000e+00> : vector<16xf32>
    %264 = vector.multi_reduction <add>, %263, %cst_124 [1] : vector<16x32xf32> to vector<16xf32>
    %265 = vector.shape_cast %264 : vector<16xf32> to vector<16x1xf32>
    %cst_125 = arith.constant 3.200000e+01 : f32
    %266 = vector.broadcast %cst_125 : f32 to vector<16x1xf32>
    %267 = arith.divf %265, %266 : vector<16x1xf32>
    %268 = vector.broadcast %260 : vector<16x1xf32> to vector<16x32xf32>
    %269 = arith.subf %252, %268 : vector<16x32xf32>
    %cst_126 = arith.constant 9.99999996E-13 : f32
    %270 = vector.broadcast %cst_126 : f32 to vector<16x1xf32>
    %271 = arith.addf %267, %270 : vector<16x1xf32>
    %272 = math.rsqrt %271 : vector<16x1xf32>
    %273 = vector.broadcast %272 : vector<16x1xf32> to vector<16x32xf32>
    %274 = arith.mulf %269, %273 : vector<16x32xf32>
    %275 = vector.broadcast %254 : vector<1x32xf32> to vector<16x32xf32>
    %276 = arith.mulf %274, %275 : vector<16x32xf32>
    %277 = vector.broadcast %256 : vector<1x32xf32> to vector<16x32xf32>
    %278 = arith.addf %276, %277 : vector<16x32xf32>
    %279 = vector.shape_cast %278 : vector<16x32xf32> to vector<2x8x32xf32>
    %280 = vector.extract_strided_slice %279 {offsets = [0, 0, 0], sizes = [2, 1, 32], strides = [1, 1, 1]} : vector<2x8x32xf32> to vector<2x1x32xf32>
    %281 = vector.shape_cast %280 : vector<2x1x32xf32> to vector<2x32xf32>
    %c0_127 = arith.constant 0 : index
    %c0_128 = arith.constant 0 : index
    %282 = vector.load %arg16[%c0_127, %c0_128] : memref<32x32xf32, #tpu.memory_space<vmem>>, vector<32x32xf32>
    %cst_129 = arith.constant dense<0.000000e+00> : vector<2x32xf32>
    %283 = tpu.matmul %281, %282, %cst_129 {dimension_numbers = #tpu.dot_dimension_numbers<[1], [0], [0], [1], [0, 0, 1, 1], [], []>} : vector<2x32xf32>, vector<32x32xf32>, vector<2x32xf32> -> vector<2x32xf32>
    %c0_130 = arith.constant 0 : index
    %c0_131 = arith.constant 0 : index
    %284 = vector.load %arg17[%c0_130, %c0_131] : memref<1x32xf32, #tpu.memory_space<vmem>>, vector<1x32xf32>
    %285 = vector.broadcast %284 : vector<1x32xf32> to vector<2x32xf32>
    %286 = arith.addf %283, %285 : vector<2x32xf32>
    %287 = math.tanh %286 : vector<2x32xf32>
    %c0_132 = arith.constant 0 : index
    %c0_133 = arith.constant 0 : index
    %288 = vector.load %arg18[%c0_132, %c0_133] : memref<32x16xf32, #tpu.memory_space<vmem>>, vector<32x16xf32>
    %cst_134 = arith.constant dense<0.000000e+00> : vector<2x16xf32>
    %289 = tpu.matmul %287, %288, %cst_134 {dimension_numbers = #tpu.dot_dimension_numbers<[1], [0], [0], [1], [0, 0, 1, 1], [], []>} : vector<2x32xf32>, vector<32x16xf32>, vector<2x16xf32> -> vector<2x16xf32>
    %c0_135 = arith.constant 0 : index
    %c0_136 = arith.constant 0 : index
    %290 = vector.load %arg19[%c0_135, %c0_136] : memref<1x16xf32, #tpu.memory_space<vmem>>, vector<1x16xf32>
    %291 = vector.broadcast %290 : vector<1x16xf32> to vector<2x16xf32>
    %292 = arith.addf %289, %291 : vector<2x16xf32>
    %c0_137 = arith.constant 0 : index
    %c0_138 = arith.constant 0 : index
    %293 = vector.load %arg20[%c0_137, %c0_138] : memref<16x2xf32, #tpu.memory_space<vmem>>, vector<16x2xf32>
    %cst_139 = arith.constant dense<0.000000e+00> : vector<2x2xf32>
    %294 = tpu.matmul %292, %293, %cst_139 {dimension_numbers = #tpu.dot_dimension_numbers<[1], [0], [0], [1], [0, 0, 1, 1], [], []>} : vector<2x16xf32>, vector<16x2xf32>, vector<2x2xf32> -> vector<2x2xf32>
    %c0_140 = arith.constant 0 : index
    %c0_141 = arith.constant 0 : index
    %295 = vector.load %arg21[%c0_140, %c0_141] : memref<1x2xf32, #tpu.memory_space<vmem>>, vector<1x2xf32>
    %296 = vector.broadcast %295 : vector<1x2xf32> to vector<2x2xf32>
    %297 = arith.addf %294, %296 : vector<2x2xf32>
    %c0_142 = arith.constant 0 : index
    %c0_143 = arith.constant 0 : index
    %298 = vector.load %arg22[%c0_142, %c0_143] : memref<2x2xf32, #tpu.memory_space<vmem>>, vector<2x2xf32>
    tpu.vector_store %arg22[%c0_142, %c0_143], %297 {strides = array<i32>} : memref<2x2xf32, #tpu.memory_space<vmem>>, vector<2x2xf32>,
    return
  }
}

</mosaic_0001>

<llo_original>
// kernel: tpu_custom_call.1
$region0: #{tpu_custom_call.1}
  #allocation0 [shape = 'u32[]', space=smem, size = 0x4, offset = 0x4, fixed_abs, tag = 'smem constant byte address 0x4 - core index']
  #allocation1 [shape = 'u32[72,128]{1,0:T(1,128)}', space=vmem, size = 0x9000, scoped, tag = 'internal scratch']
  %s0 = inlined_call_operand.hbm [shape: f32[16,32], index: 0, kind: input, shape index: {}]
  %s1 = inlined_call_operand.hbm [shape: f32[2,1,8], index: 1, kind: input, shape index: {}]
  %s2 = inlined_call_operand.hbm [shape: f32[1,32], index: 2, kind: input, shape index: {}]
  %s3 = inlined_call_operand.hbm [shape: f32[1,32], index: 3, kind: input, shape index: {}]
  %s4 = inlined_call_operand.vmem [shape: f32[2,32,96], index: 4, kind: input, shape index: {}]
  %s5 = inlined_call_operand.hbm [shape: f32[2,1,96], index: 5, kind: input, shape index: {}]
  %s6 = inlined_call_operand.vmem [shape: f32[2,32,32], index: 6, kind: input, shape index: {}]
  %s7 = inlined_call_operand.hbm [shape: f32[2,1,32], index: 7, kind: input, shape index: {}]
  %s8 = inlined_call_operand.hbm [shape: f32[2,1,32], index: 8, kind: input, shape index: {}]
  %s9 = inlined_call_operand.hbm [shape: f32[2,1,32], index: 9, kind: input, shape index: {}]
  %s10 = inlined_call_operand.vmem [shape: f32[2,32,64], index: 10, kind: input, shape index: {}]
  %s11 = inlined_call_operand.hbm [shape: f32[2,1,64], index: 11, kind: input, shape index: {}]
  %s12 = inlined_call_operand.vmem [shape: f32[2,64,32], index: 12, kind: input, shape index: {}]
  %s13 = inlined_call_operand.hbm [shape: f32[2,1,32], index: 13, kind: input, shape index: {}]
  %s14 = inlined_call_operand.hbm [shape: f32[2,1,32], index: 14, kind: input, shape index: {}]
  %s15 = inlined_call_operand.hbm [shape: f32[2,1,32], index: 15, kind: input, shape index: {}]
  %s16 = inlined_call_operand.hbm [shape: f32[32,32], index: 16, kind: input, shape index: {}]
  %s17 = inlined_call_operand.hbm [shape: f32[1,32], index: 17, kind: input, shape index: {}]
  %s18 = inlined_call_operand.vmem [shape: f32[32,16], index: 18, kind: input, shape index: {}]
  %s19 = inlined_call_operand.vmem [shape: f32[1,16], index: 19, kind: input, shape index: {}]
  %s20 = inlined_call_operand.vmem [shape: f32[16,2], index: 20, kind: input, shape index: {}]
  %s21 = inlined_call_operand.vmem [shape: f32[1,2], index: 21, kind: input, shape index: {}]
  %s22 = inlined_call_operand.hbm [shape: f32[2,2], index: 22, kind: output, shape index: {}]
  %s23 = sld [smem:[#allocation0]]
  $region154: #{tpu_custom_call.1} parent=0
    _
  %s25 = ssub.s32 1, %s23
  %s26 = scalar_select 0, %s25, %s23
  $region1: #{tpu_custom_call.1} parent=0
    #allocation2 [shape = 'u8[8192]{0}', space=vmem, size = 0x2000, scoped, tag = 'input window, operand 0, single buffered']
    #allocation3 [shape = 's32[1]{0}', space=sflag, size = 0x4, scoped, tag = 'scoped memory for tpu_custom_call.1']
    #allocation4 [shape = 's32[1]{0}', space=sflag, size = 0x4, scoped, tag = 'scoped memory for tpu_custom_call.1']
    #allocation5 [shape = 'u8[1024]{0}', space=vmem, size = 0x400, scoped, tag = 'input window, operand 1, single buffered']
    #allocation6 [shape = 's32[1]{0}', space=sflag, size = 0x4, scoped, tag = 'scoped memory for tpu_custom_call.1']
    #allocation7 [shape = 'u8[512]{0}', space=vmem, size = 0x400, scoped, tag = 'input window, operand 2, single buffered']
    #allocation8 [shape = 'u8[512]{0}', space=vmem, size = 0x400, scoped, tag = 'input window, operand 3, single buffered']
    #allocation9 [shape = 's32[1]{0}', space=sflag, size = 0x4, scoped, tag = 'scoped memory for tpu_custom_call.1']
    #allocation10 [shape = 'u8[1024]{0}', space=vmem, size = 0x400, scoped, tag = 'input window, operand 5, single buffered']
    #allocation11 [shape = 'u8[1024]{0}', space=vmem, size = 0x400, scoped, tag = 'input window, operand 7, single buffered']
    #allocation12 [shape = 's32[1]{0}', space=sflag, size = 0x4, scoped, tag = 'scoped memory for tpu_custom_call.1']
    #allocation13 [shape = 'u8[1024]{0}', space=vmem, size = 0x400, scoped, tag = 'input window, operand 8, single buffered']
    #allocation14 [shape = 'u8[1024]{0}', space=vmem, size = 0x400, scoped, tag = 'input window, operand 9, single buffered']
    #allocation15 [shape = 's32[1]{0}', space=sflag, size = 0x4, scoped, tag = 'scoped memory for tpu_custom_call.1']
    #allocation16 [shape = 'u8[1024]{0}', space=vmem, size = 0x400, scoped, tag = 'input window, operand 11, single buffered']
    #allocation17 [shape = 'u8[1024]{0}', space=vmem, size = 0x400, scoped, tag = 'input window, operand 13, single buffered']
    #allocation18 [shape = 's32[1]{0}', space=sflag, size = 0x4, scoped, tag = 'scoped memory for tpu_custom_call.1']
    #allocation19 [shape = 'u8[1024]{0}', space=vmem, size = 0x400, scoped, tag = 'input window, operand 14, single buffered']
    #allocation20 [shape = 'u8[1024]{0}', space=vmem, size = 0x400, scoped, tag = 'input window, operand 15, single buffered']
    #allocation21 [shape = 's32[1]{0}', space=sflag, size = 0x4, scoped, tag = 'scoped memory for tpu_custom_call.1']
    #allocation22 [shape = 'u8[16384]{0}', space=vmem, size = 0x4000, scoped, tag = 'input window, operand 16, single buffered']
    #allocation23 [shape = 'u8[512]{0}', space=vmem, size = 0x400, scoped, tag = 'input window, operand 17, single buffered']
    #allocation24 [shape = 's32[1]{0}', space=sflag, size = 0x4, scoped, tag = 'scoped memory for tpu_custom_call.1']
    #allocation25 [shape = 'u8[1024]{0}', space=vmem, size = 0x400, scoped, tag = 'output window, operand 0, single buffered']
    %27 = vsyncpa [#allocation3], 0
    %28 = vsyncpa [#allocation6], 0
    %29 = vsyncpa [#allocation9], 0
    %30 = vsyncpa [#allocation12], 0
    %31 = vsyncpa [#allocation15], 0
    %32 = vsyncpa [#allocation18], 0
    %33 = vsyncpa [#allocation21], 0
    %34 = vsyncpa [#allocation24], 0
    %35 = vsyncpa [#allocation4], 0
    // Predicated region
    $region2: #{tpu_custom_call.1} parent=1 // pred_check
      _
    $region3: #{tpu_custom_call.1} parent=1 // pred_check_branch
      %37 = sbr.rel (0) target = $region5
    $region4: #{tpu_custom_call.1} parent=1 // pred_region
      %39 = vsyncadd [#allocation3], 0
      %s40 = sshll.u32 %s0, 4
      %s41 = int_to_ptr.hbm [resolvable:$true] %s40
      %s42 = sshll.u32 [#allocation2], 4
      %s43 = int_to_ptr.vmem [resolvable:$true] %s42
      %48 = dma.hbm_to_vmem [thread:$0]  %s41, 256, %s43, [#allocation3], 128, 128, 8
    $region5: #{tpu_custom_call.1} parent=1 // pred_fallthru
      _
    // Predicated region
    $region6: #{tpu_custom_call.1} parent=1 // pred_check
      _
    $region7: #{tpu_custom_call.1} parent=1 // pred_check_branch
      %50 = sbr.rel (0) target = $region9
    $region8: #{tpu_custom_call.1} parent=1 // pred_region
      %52 = vsyncadd [#allocation6], 0
      %s53 = sshll.u32 %s1, 4
      %s54 = int_to_ptr.hbm [resolvable:$true] %s53
      %s55 = sshll.u32 [#allocation5], 4
      %s56 = int_to_ptr.vmem [resolvable:$true] %s55
      %61 = dma.hbm_to_vmem [thread:$0]  %s54, 32, %s56, [#allocation6], 16, 16, 1
    $region9: #{tpu_custom_call.1} parent=1 // pred_fallthru
      _
    // Predicated region
    $region10: #{tpu_custom_call.1} parent=1 // pred_check
      _
    $region11: #{tpu_custom_call.1} parent=1 // pred_check_branch
      %63 = sbr.rel (0) target = $region13
    $region12: #{tpu_custom_call.1} parent=1 // pred_region
      %65 = vsyncadd [#allocation6], 0
      %s67 = sshll.u32 %s2, 4
      %s68 = int_to_ptr.hbm [resolvable:$true] %s67
      %s69 = sshll.u32 [#allocation7], 4
      %s70 = int_to_ptr.vmem [resolvable:$true] %s69
      %72 = dma.hbm_to_vmem [thread:$0]  %s68, 16, %s70, [#allocation6]
    $region13: #{tpu_custom_call.1} parent=1 // pred_fallthru
      _
    // Predicated region
    $region14: #{tpu_custom_call.1} parent=1 // pred_check
      _
    $region15: #{tpu_custom_call.1} parent=1 // pred_check_branch
      %74 = sbr.rel (0) target = $region17
    $region16: #{tpu_custom_call.1} parent=1 // pred_region
      %76 = vsyncadd [#allocation9], 0
      %s78 = sshll.u32 %s3, 4
      %s79 = int_to_ptr.hbm [resolvable:$true] %s78
      %s80 = sshll.u32 [#allocation8], 4
      %s81 = int_to_ptr.vmem [resolvable:$true] %s80
      %83 = dma.hbm_to_vmem [thread:$0]  %s79, 16, %s81, [#allocation9]
    $region17: #{tpu_custom_call.1} parent=1 // pred_fallthru
      _
    // Predicated region
    $region18: #{tpu_custom_call.1} parent=1 // pred_check
      _
    $region19: #{tpu_custom_call.1} parent=1 // pred_check_branch
      %85 = sbr.rel (0) target = $region21
    $region20: #{tpu_custom_call.1} parent=1 // pred_region
      _
    $region21: #{tpu_custom_call.1} parent=1 // pred_fallthru
      _
    // Predicated region
    $region22: #{tpu_custom_call.1} parent=1 // pred_check
      _
    $region23: #{tpu_custom_call.1} parent=1 // pred_check_branch
      %87 = sbr.rel (0) target = $region25
    $region24: #{tpu_custom_call.1} parent=1 // pred_region
      %89 = vsyncadd [#allocation9], 0
      %s90 = sshll.u32 %s5, 4
      %s91 = int_to_ptr.hbm [resolvable:$true] %s90
      %s92 = sshll.u32 [#allocation10], 4
      %s93 = int_to_ptr.vmem [resolvable:$true] %s92
      %98 = dma.hbm_to_vmem [thread:$0]  %s91, 32, %s93, [#allocation9], 16, 16, 1
    $region25: #{tpu_custom_call.1} parent=1 // pred_fallthru
      _
    // Predicated region
    $region26: #{tpu_custom_call.1} parent=1 // pred_check
      _
    $region27: #{tpu_custom_call.1} parent=1 // pred_check_branch
      %100 = sbr.rel (0) target = $region29
    $region28: #{tpu_custom_call.1} parent=1 // pred_region
      _
    $region29: #{tpu_custom_call.1} parent=1 // pred_fallthru
      _
    // Predicated region
    $region30: #{tpu_custom_call.1} parent=1 // pred_check
      _
    $region31: #{tpu_custom_call.1} parent=1 // pred_check_branch
      %102 = sbr.rel (0) target = $region33
    $region32: #{tpu_custom_call.1} parent=1 // pred_region
      %104 = vsyncadd [#allocation12], 0
      %s105 = sshll.u32 %s7, 4
      %s106 = int_to_ptr.hbm [resolvable:$true] %s105
      %s107 = sshll.u32 [#allocation11], 4
      %s108 = int_to_ptr.vmem [resolvable:$true] %s107
      %113 = dma.hbm_to_vmem [thread:$0]  %s106, 32, %s108, [#allocation12], 16, 16, 1
    $region33: #{tpu_custom_call.1} parent=1 // pred_fallthru
      _
    // Predicated region
    $region34: #{tpu_custom_call.1} parent=1 // pred_check
      _
    $region35: #{tpu_custom_call.1} parent=1 // pred_check_branch
      %115 = sbr.rel (0) target = $region37
    $region36: #{tpu_custom_call.1} parent=1 // pred_region
      %117 = vsyncadd [#allocation12], 0
      %s118 = sshll.u32 %s8, 4
      %s119 = int_to_ptr.hbm [resolvable:$true] %s118
      %s120 = sshll.u32 [#allocation13], 4
      %s121 = int_to_ptr.vmem [resolvable:$true] %s120
      %126 = dma.hbm_to_vmem [thread:$0]  %s119, 32, %s121, [#allocation12], 16, 16, 1
    $region37: #{tpu_custom_call.1} parent=1 // pred_fallthru
      _
    // Predicated region
    $region38: #{tpu_custom_call.1} parent=1 // pred_check
      _
    $region39: #{tpu_custom_call.1} parent=1 // pred_check_branch
      %128 = sbr.rel (0) target = $region41
    $region40: #{tpu_custom_call.1} parent=1 // pred_region
      %130 = vsyncadd [#allocation15], 0
      %s131 = sshll.u32 %s9, 4
      %s132 = int_to_ptr.hbm [resolvable:$true] %s131
      %s133 = sshll.u32 [#allocation14], 4
      %s134 = int_to_ptr.vmem [resolvable:$true] %s133
      %139 = dma.hbm_to_vmem [thread:$0]  %s132, 32, %s134, [#allocation15], 16, 16, 1
    $region41: #{tpu_custom_call.1} parent=1 // pred_fallthru
      _
    // Predicated region
    $region42: #{tpu_custom_call.1} parent=1 // pred_check
      _
    $region43: #{tpu_custom_call.1} parent=1 // pred_check_branch
      %141 = sbr.rel (0) target = $region45
    $region44: #{tpu_custom_call.1} parent=1 // pred_region
      _
    $region45: #{tpu_custom_call.1} parent=1 // pred_fallthru
      _
    // Predicated region
    $region46: #{tpu_custom_call.1} parent=1 // pred_check
      _
    $region47: #{tpu_custom_call.1} parent=1 // pred_check_branch
      %143 = sbr.rel (0) target = $region49
    $region48: #{tpu_custom_call.1} parent=1 // pred_region
      %145 = vsyncadd [#allocation15], 0
      %s146 = sshll.u32 %s11, 4
      %s147 = int_to_ptr.hbm [resolvable:$true] %s146
      %s148 = sshll.u32 [#allocation16], 4
      %s149 = int_to_ptr.vmem [resolvable:$true] %s148
      %154 = dma.hbm_to_vmem [thread:$0]  %s147, 32, %s149, [#allocation15], 16, 16, 1
    $region49: #{tpu_custom_call.1} parent=1 // pred_fallthru
      _
    // Predicated region
    $region50: #{tpu_custom_call.1} parent=1 // pred_check
      _
    $region51: #{tpu_custom_call.1} parent=1 // pred_check_branch
      %156 = sbr.rel (0) target = $region53
    $region52: #{tpu_custom_call.1} parent=1 // pred_region
      _
    $region53: #{tpu_custom_call.1} parent=1 // pred_fallthru
      _
    // Predicated region
    $region54: #{tpu_custom_call.1} parent=1 // pred_check
      _
    $region55: #{tpu_custom_call.1} parent=1 // pred_check_branch
      %158 = sbr.rel (0) target = $region57
    $region56: #{tpu_custom_call.1} parent=1 // pred_region
      %160 = vsyncadd [#allocation18], 0
      %s161 = sshll.u32 %s13, 4
      %s162 = int_to_ptr.hbm [resolvable:$true] %s161
      %s163 = sshll.u32 [#allocation17], 4
      %s164 = int_to_ptr.vmem [resolvable:$true] %s163
      %169 = dma.hbm_to_vmem [thread:$0]  %s162, 32, %s164, [#allocation18], 16, 16, 1
    $region57: #{tpu_custom_call.1} parent=1 // pred_fallthru
      _
    // Predicated region
    $region58: #{tpu_custom_call.1} parent=1 // pred_check
      _
    $region59: #{tpu_custom_call.1} parent=1 // pred_check_branch
      %171 = sbr.rel (0) target = $region61
    $region60: #{tpu_custom_call.1} parent=1 // pred_region
      %173 = vsyncadd [#allocation18], 0
      %s174 = sshll.u32 %s14, 4
      %s175 = int_to_ptr.hbm [resolvable:$true] %s174
      %s176 = sshll.u32 [#allocation19], 4
      %s177 = int_to_ptr.vmem [resolvable:$true] %s176
      %182 = dma.hbm_to_vmem [thread:$0]  %s175, 32, %s177, [#allocation18], 16, 16, 1
    $region61: #{tpu_custom_call.1} parent=1 // pred_fallthru
      _
    // Predicated region
    $region62: #{tpu_custom_call.1} parent=1 // pred_check
      _
    $region63: #{tpu_custom_call.1} parent=1 // pred_check_branch
      %184 = sbr.rel (0) target = $region65
    $region64: #{tpu_custom_call.1} parent=1 // pred_region
      %186 = vsyncadd [#allocation21], 0
      %s187 = sshll.u32 %s15, 4
      %s188 = int_to_ptr.hbm [resolvable:$true] %s187
      %s189 = sshll.u32 [#allocation20], 4
      %s190 = int_to_ptr.vmem [resolvable:$true] %s189
      %195 = dma.hbm_to_vmem [thread:$0]  %s188, 32, %s190, [#allocation21], 16, 16, 1
    $region65: #{tpu_custom_call.1} parent=1 // pred_fallthru
      _
    // Predicated region
    $region66: #{tpu_custom_call.1} parent=1 // pred_check
      _
    $region67: #{tpu_custom_call.1} parent=1 // pred_check_branch
      %197 = sbr.rel (0) target = $region69
    $region68: #{tpu_custom_call.1} parent=1 // pred_region
      %199 = vsyncadd [#allocation21], 0
      %s200 = sshll.u32 %s16, 4
      %s201 = int_to_ptr.hbm [resolvable:$true] %s200
      %s202 = sshll.u32 [#allocation22], 4
      %s203 = int_to_ptr.vmem [resolvable:$true] %s202
      %208 = dma.hbm_to_vmem [thread:$0]  %s201, 512, %s203, [#allocation21], 128, 128, 8
    $region69: #{tpu_custom_call.1} parent=1 // pred_fallthru
      _
    // Predicated region
    $region70: #{tpu_custom_call.1} parent=1 // pred_check
      _
    $region71: #{tpu_custom_call.1} parent=1 // pred_check_branch
      %210 = sbr.rel (0) target = $region73
    $region72: #{tpu_custom_call.1} parent=1 // pred_region
      %212 = vsyncadd [#allocation24], 0
      %s214 = sshll.u32 %s17, 4
      %s215 = int_to_ptr.hbm [resolvable:$true] %s214
      %s216 = sshll.u32 [#allocation23], 4
      %s217 = int_to_ptr.vmem [resolvable:$true] %s216
      %219 = dma.hbm_to_vmem [thread:$0]  %s215, 16, %s217, [#allocation24]
    $region73: #{tpu_custom_call.1} parent=1 // pred_fallthru
      _
    // Predicated region
    $region74: #{tpu_custom_call.1} parent=1 // pred_check
      _
    $region75: #{tpu_custom_call.1} parent=1 // pred_check_branch
      %221 = sbr.rel (0) target = $region77
    $region76: #{tpu_custom_call.1} parent=1 // pred_region
      _
    $region77: #{tpu_custom_call.1} parent=1 // pred_fallthru
      _
    // Predicated region
    $region78: #{tpu_custom_call.1} parent=1 // pred_check
      _
    $region79: #{tpu_custom_call.1} parent=1 // pred_check_branch
      %223 = sbr.rel (0) target = $region81
    $region80: #{tpu_custom_call.1} parent=1 // pred_region
      _
    $region81: #{tpu_custom_call.1} parent=1 // pred_fallthru
      _
    // Predicated region
    $region82: #{tpu_custom_call.1} parent=1 // pred_check
      _
    $region83: #{tpu_custom_call.1} parent=1 // pred_check_branch
      %225 = sbr.rel (0) target = $region85
    $region84: #{tpu_custom_call.1} parent=1 // pred_region
      _
    $region85: #{tpu_custom_call.1} parent=1 // pred_fallthru
      _
    // Predicated region
    $region86: #{tpu_custom_call.1} parent=1 // pred_check
      _
    $region87: #{tpu_custom_call.1} parent=1 // pred_check_branch
      %227 = sbr.rel (0) target = $region89
    $region88: #{tpu_custom_call.1} parent=1 // pred_region
      _
    $region89: #{tpu_custom_call.1} parent=1 // pred_fallthru
      _
    // Predicated region
    $region90: #{tpu_custom_call.1} parent=1 // pred_check
      _
    $region91: #{tpu_custom_call.1} parent=1 // pred_check_branch
      %229 = sbr.rel (0) target = $region93
    $region92: #{tpu_custom_call.1} parent=1 // pred_region
      %231 = dma.done [#allocation3], 256
    $region93: #{tpu_custom_call.1} parent=1 // pred_fallthru
      _
    // Predicated region
    $region94: #{tpu_custom_call.1} parent=1 // pred_check
      _
    $region95: #{tpu_custom_call.1} parent=1 // pred_check_branch
      %233 = sbr.rel (0) target = $region97
    $region96: #{tpu_custom_call.1} parent=1 // pred_region
      %235 = dma.done [#allocation6], 32
    $region97: #{tpu_custom_call.1} parent=1 // pred_fallthru
      _
    // Predicated region
    $region98: #{tpu_custom_call.1} parent=1 // pred_check
      _
    $region99: #{tpu_custom_call.1} parent=1 // pred_check_branch
      %237 = sbr.rel (0) target = $region101
    $region100: #{tpu_custom_call.1} parent=1 // pred_region
      %239 = dma.done [#allocation6], 16
    $region101: #{tpu_custom_call.1} parent=1 // pred_fallthru
      _
    // Predicated region
    $region102: #{tpu_custom_call.1} parent=1 // pred_check
      _
    $region103: #{tpu_custom_call.1} parent=1 // pred_check_branch
      %241 = sbr.rel (0) target = $region105
    $region104: #{tpu_custom_call.1} parent=1 // pred_region
      %243 = dma.done [#allocation9], 16
    $region105: #{tpu_custom_call.1} parent=1 // pred_fallthru
      _
    // Predicated region
    $region106: #{tpu_custom_call.1} parent=1 // pred_check
      _
    $region107: #{tpu_custom_call.1} parent=1 // pred_check_branch
      %245 = sbr.rel (0) target = $region109
    $region108: #{tpu_custom_call.1} parent=1 // pred_region
      %247 = dma.done [#allocation9], 32
    $region109: #{tpu_custom_call.1} parent=1 // pred_fallthru
      _
    // Predicated region
    $region110: #{tpu_custom_call.1} parent=1 // pred_check
      _
    $region111: #{tpu_custom_call.1} parent=1 // pred_check_branch
      %249 = sbr.rel (0) target = $region113
    $region112: #{tpu_custom_call.1} parent=1 // pred_region
      %251 = dma.done [#allocation12], 32
    $region113: #{tpu_custom_call.1} parent=1 // pred_fallthru
      _
    // Predicated region
    $region114: #{tpu_custom_call.1} parent=1 // pred_check
      _
    $region115: #{tpu_custom_call.1} parent=1 // pred_check_branch
      %253 = sbr.rel (0) target = $region117
    $region116: #{tpu_custom_call.1} parent=1 // pred_region
      %255 = dma.done [#allocation12], 32
    $region117: #{tpu_custom_call.1} parent=1 // pred_fallthru
      _
    // Predicated region
    $region118: #{tpu_custom_call.1} parent=1 // pred_check
      _
    $region119: #{tpu_custom_call.1} parent=1 // pred_check_branch
      %257 = sbr.rel (0) target = $region121
    $region120: #{tpu_custom_call.1} parent=1 // pred_region
      %259 = dma.done [#allocation15], 32
    $region121: #{tpu_custom_call.1} parent=1 // pred_fallthru
      _
    // Predicated region
    $region122: #{tpu_custom_call.1} parent=1 // pred_check
      _
    $region123: #{tpu_custom_call.1} parent=1 // pred_check_branch
      %261 = sbr.rel (0) target = $region125
    $region124: #{tpu_custom_call.1} parent=1 // pred_region
      %263 = dma.done [#allocation15], 32
    $region125: #{tpu_custom_call.1} parent=1 // pred_fallthru
      _
    // Predicated region
    $region126: #{tpu_custom_call.1} parent=1 // pred_check
      _
    $region127: #{tpu_custom_call.1} parent=1 // pred_check_branch
      %265 = sbr.rel (0) target = $region129
    $region128: #{tpu_custom_call.1} parent=1 // pred_region
      %267 = dma.done [#allocation18], 32
    $region129: #{tpu_custom_call.1} parent=1 // pred_fallthru
      _
    // Predicated region
    $region130: #{tpu_custom_call.1} parent=1 // pred_check
      _
    $region131: #{tpu_custom_call.1} parent=1 // pred_check_branch
      %269 = sbr.rel (0) target = $region133
    $region132: #{tpu_custom_call.1} parent=1 // pred_region
      %271 = dma.done [#allocation18], 32
    $region133: #{tpu_custom_call.1} parent=1 // pred_fallthru
      _
    // Predicated region
    $region134: #{tpu_custom_call.1} parent=1 // pred_check
      _
    $region135: #{tpu_custom_call.1} parent=1 // pred_check_branch
      %273 = sbr.rel (0) target = $region137
    $region136: #{tpu_custom_call.1} parent=1 // pred_region
      %275 = dma.done [#allocation21], 32
    $region137: #{tpu_custom_call.1} parent=1 // pred_fallthru
      _
    // Predicated region
    $region138: #{tpu_custom_call.1} parent=1 // pred_check
      _
    $region139: #{tpu_custom_call.1} parent=1 // pred_check_branch
      %277 = sbr.rel (0) target = $region141
    $region140: #{tpu_custom_call.1} parent=1 // pred_region
      %279 = dma.done [#allocation21], 512
    $region141: #{tpu_custom_call.1} parent=1 // pred_fallthru
      _
    // Predicated region
    $region142: #{tpu_custom_call.1} parent=1 // pred_check
      _
    $region143: #{tpu_custom_call.1} parent=1 // pred_check_branch
      %281 = sbr.rel (0) target = $region145
    $region144: #{tpu_custom_call.1} parent=1 // pred_region
      %283 = dma.done [#allocation24], 16
    $region145: #{tpu_custom_call.1} parent=1 // pred_fallthru
      _
    %v284 = vld [vmem:[#allocation2] sm:$0xff]
    %v285 = vld [vmem:[#allocation2 + $0x8] sm:$0xff]
    %v286 = vld [vmem:[#allocation7] sm:$0x1]
    %v287 = vld [vmem:[#allocation8] sm:$0x1]
    %vm288 = vcmask 261120
    %v289 = vsel %vm288, %v284, 0.0
    %290 = vadd.xlane.f32.xlu0 %v289
    %v291 = vpop.xlane.xlu0 %290
    %v292 = vsel %vm288, %v285, 0.0
    %293 = vadd.xlane.f32.xlu0 %v292
    %v294 = vpop.xlane.xlu0 %293
    %v295 = vrcp.pop 32.0
    %v296 = vmul.f32 32.0, %v295
    %v297 = vsub.f32 1.0, %v296
    %v298 = vmul.f32 %v295, %v297
    %v299 = vadd.f32 %v295, %v298
    %vm300 = vweird.f32 %v295
    %v301 = vsel %vm300, %v295, %v299
    %v302 = vmul.f32 %v291, %v301
    %v303 = vmul.f32 %v294, %v301
    %v304 = vsub.f32 %v284, %v302
    %v305 = vsub.f32 %v285, %v303
    %v306 = vmul.f32 %v304, %v304
    %v307 = vmul.f32 %v305, %v305
    %v308 = vsel %vm288, %v306, 0.0
    %309 = vadd.xlane.f32.xlu0 %v308
    %v310 = vpop.xlane.xlu0 %309
    %v311 = vsel %vm288, %v307, 0.0
    %312 = vadd.xlane.f32.xlu0 %v311
    %v313 = vpop.xlane.xlu0 %312
    %v314 = vmul.f32 %v310, %v301
    %v315 = vmul.f32 %v313, %v301
    %v316 = vadd.f32 %v314, 1e-12
    %v317 = vadd.f32 %v315, 1e-12
    %v318 = vrsqrt.pop %v316
    %v319 = vmul.f32 %v318, %v316
    %v320 = vmul.f32 %v319, %v318
    %v321 = vmul.f32 0.5, %v320
    %v322 = vsub.f32 1.5, %v321
    %v323 = vmul.f32 %v318, %v322
    %vm324 = vweird.f32 %v316
    %vm325 = vweird.f32 %v318
    %vm326 = vmor %vm324, %vm325
    %v327 = vsel %vm326, %v318, %v323
    %v328 = vrsqrt.pop %v317
    %v329 = vmul.f32 %v328, %v317
    %v330 = vmul.f32 %v329, %v328
    %v331 = vmul.f32 0.5, %v330
    %v332 = vsub.f32 1.5, %v331
    %v333 = vmul.f32 %v328, %v332
    %vm334 = vweird.f32 %v317
    %vm335 = vweird.f32 %v328
    %vm336 = vmor %vm334, %vm335
    %v337 = vsel %vm336, %v328, %v333
    %v338 = vmul.f32 %v304, %v327
    %v339 = vmul.f32 %v305, %v337
    %v341 = vperm.slane %v286, 0
    %v343 = vmul.f32 %v338, %v341
    %v344 = vmul.f32 %v339, %v341
    %v346 = vperm.slane %v287, 0
    %v348 = vadd.f32 %v343, %v346
    %v349 = vadd.f32 %v344, %v346
    %v350 = vld [vmem:[#allocation5] sm:$0x1]
    %v351 = vld [vmem:[#allocation5 + $0x1] sm:$0x1]
    %v352 = vld [vmem:[%s4] sm:$0xff]
    %v353 = vld [vmem:[%s4 + $0x8] sm:$0xff]
    %v354 = vld [vmem:[%s4 + $0x10] sm:$0xff]
    %v355 = vld [vmem:[%s4 + $0x18] sm:$0xff]
    %v356 = vld [vmem:[#allocation10] sm:$0x1]
    %v358 = vperm.slane %v356, 0
    %v361 = vsel %vm288, %v348, 0
    %v364 = vsel %vm288, %v349, 0
    %366 = vmatpush.msra.mxu0 0.0
    %367 = vmatpush.msra.mxu0 0.0
    %368 = vmatpush.msra.mxu0 0.0
    %369 = vmatpush.msra.mxu0 0.0
    %370 = vmatpush.msra.mxu0 0.0
    %371 = vmatpush.msra.mxu0 0.0
    %372 = vmatpush.msra.mxu0 0.0
    %373 = vmatpush.msra.mxu0 0.0
    %374 = vmatpush.msra.mxu0 0.0
    %375 = vmatpush.msra.mxu0 0.0
    %376 = vmatpush.msra.mxu0 0.0
    %377 = vmatpush.msra.mxu0 0.0
    %378 = vmatpush.msra.mxu0 %v355
    %379 = vmatpush.msra.mxu0 %v354
    %380 = vmatpush.msra.mxu0 %v353
    %381 = vmatpush.msra.mxu0 %v352
    %382 = vmatmul.f32.gmra.mxu0 %v361
    %v383 = vpop.f32.mrf.mxu0
    %v384 = vadd.f32 %v358, %v383
    %385 = vmatmul.f32.gmra.mxu0 %v364
    %v386 = vpop.f32.mrf.mxu0
    %v387 = vadd.f32 %v358, %v386
    %388 = vdwg.mxu0
    %391 = vrot.lane.b32.xlu0 %v384, 112
    %v392 = vpop.permute.xlu0 %391
    %393 = vrot.lane.b32.xlu0 %v387, 112
    %v394 = vpop.permute.xlu0 %393
    %v397 = vperm.slane %v350, 0
    %v398 = vperm.slane %v351, 0
    %401 = vrot.lane.b32.xlu0 %v384, 96
    %v402 = vpop.permute.xlu0 %401
    %vm403 = vcmask 130048
    %v404 = vsel %vm403, %v384, 0
    %v406 = vsel %vm403, %v402, 0
    %408 = vmatpush.xpose.msra.mxu0 0.0
    %409 = vmatpush.xpose.msra.mxu0 0.0
    %410 = vmatpush.xpose.msra.mxu0 0.0
    %411 = vmatpush.xpose.msra.mxu0 0.0
    %412 = vmatpush.xpose.msra.mxu0 0.0
    %413 = vmatpush.xpose.msra.mxu0 0.0
    %414 = vmatpush.xpose.msra.mxu0 0.0
    %415 = vmatpush.xpose.msra.mxu0 0.0
    %416 = vmatpush.xpose.msra.mxu0 0.0
    %417 = vmatpush.xpose.msra.mxu0 0.0
    %418 = vmatpush.xpose.msra.mxu0 0.0
    %419 = vmatpush.xpose.msra.mxu0 0.0
    %420 = vmatpush.xpose.msra.mxu0 0.0
    %421 = vmatpush.xpose.msra.mxu0 0.0
    %422 = vmatpush.xpose.msra.mxu0 0.0
    %423 = vmatpush.xpose.msra.mxu0 %v406
    %424 = vmatmul.f32.gmra.mxu0 %v404
    %v425 = vpop.f32.mrf.mxu0
    %v426 = vadd.f32 %v397, %v425
    %427 = vdwg.mxu0
    %428 = vrot.lane.b32.xlu0 %v387, 96
    %v429 = vpop.permute.xlu0 %428
    %v430 = vsel %vm403, %v387, 0
    %v432 = vsel %vm403, %v429, 0
    %434 = vmatpush.xpose.msra.mxu0 0.0
    %435 = vmatpush.xpose.msra.mxu0 0.0
    %436 = vmatpush.xpose.msra.mxu0 0.0
    %437 = vmatpush.xpose.msra.mxu0 0.0
    %438 = vmatpush.xpose.msra.mxu0 0.0
    %439 = vmatpush.xpose.msra.mxu0 0.0
    %440 = vmatpush.xpose.msra.mxu0 0.0
    %441 = vmatpush.xpose.msra.mxu0 0.0
    %442 = vmatpush.xpose.msra.mxu0 0.0
    %443 = vmatpush.xpose.msra.mxu0 0.0
    %444 = vmatpush.xpose.msra.mxu0 0.0
    %445 = vmatpush.xpose.msra.mxu0 0.0
    %446 = vmatpush.xpose.msra.mxu0 0.0
    %447 = vmatpush.xpose.msra.mxu0 0.0
    %448 = vmatpush.xpose.msra.mxu0 0.0
    %449 = vmatpush.xpose.msra.mxu0 %v432
    %450 = vmatmul.f32.gmra.mxu0 %v430
    %v451 = vpop.f32.mrf.mxu0
    %v452 = vadd.f32 %v398, %v451
    %453 = vdwg.mxu0
    %454 = vrot.lane.b32.xlu0 %v392, 96
    %v455 = vpop.permute.xlu0 %454
    %v456 = vsel %vm403, %v392, 0
    %v458 = vsel %vm403, %v455, 0
    %460 = vmatpush.xpose.msra.mxu0 0.0
    %461 = vmatpush.xpose.msra.mxu0 0.0
    %462 = vmatpush.xpose.msra.mxu0 0.0
    %463 = vmatpush.xpose.msra.mxu0 0.0
    %464 = vmatpush.xpose.msra.mxu0 0.0
    %465 = vmatpush.xpose.msra.mxu0 0.0
    %466 = vmatpush.xpose.msra.mxu0 0.0
    %467 = vmatpush.xpose.msra.mxu0 0.0
    %468 = vmatpush.xpose.msra.mxu0 0.0
    %469 = vmatpush.xpose.msra.mxu0 0.0
    %470 = vmatpush.xpose.msra.mxu0 0.0
    %471 = vmatpush.xpose.msra.mxu0 0.0
    %472 = vmatpush.xpose.msra.mxu0 0.0
    %473 = vmatpush.xpose.msra.mxu0 0.0
    %474 = vmatpush.xpose.msra.mxu0 0.0
    %475 = vmatpush.xpose.msra.mxu0 %v458
    %476 = vmatmul.f32.gmra.mxu0 %v456
    %v477 = vpop.f32.mrf.mxu0
    %v478 = vadd.f32 %v397, %v477
    %479 = vdwg.mxu0
    %480 = vrot.lane.b32.xlu0 %v394, 96
    %v481 = vpop.permute.xlu0 %480
    %v482 = vsel %vm403, %v394, 0
    %v484 = vsel %vm403, %v481, 0
    %486 = vmatpush.xpose.msra.mxu0 0.0
    %487 = vmatpush.xpose.msra.mxu0 0.0
    %488 = vmatpush.xpose.msra.mxu0 0.0
    %489 = vmatpush.xpose.msra.mxu0 0.0
    %490 = vmatpush.xpose.msra.mxu0 0.0
    %491 = vmatpush.xpose.msra.mxu0 0.0
    %492 = vmatpush.xpose.msra.mxu0 0.0
    %493 = vmatpush.xpose.msra.mxu0 0.0
    %494 = vmatpush.xpose.msra.mxu0 0.0
    %495 = vmatpush.xpose.msra.mxu0 0.0
    %496 = vmatpush.xpose.msra.mxu0 0.0
    %497 = vmatpush.xpose.msra.mxu0 0.0
    %498 = vmatpush.xpose.msra.mxu0 0.0
    %499 = vmatpush.xpose.msra.mxu0 0.0
    %500 = vmatpush.xpose.msra.mxu0 0.0
    %501 = vmatpush.xpose.msra.mxu0 %v484
    %502 = vmatmul.f32.gmra.mxu0 %v482
    %v503 = vpop.f32.mrf.mxu0
    %v504 = vadd.f32 %v398, %v503
    %505 = vdwg.mxu0
    %vm506 = vcmask 64512
    %v507 = vsel %vm506, %v426, -inf
    %508 = vmax.xlane.f32.xlu0 %v507
    %v509 = vpop.xlane.xlu0 %508
    %v510 = vsel %vm506, %v452, -inf
    %511 = vmax.xlane.f32.xlu0 %v510
    %v512 = vpop.xlane.xlu0 %511
    %v513 = vsel %vm506, %v478, -inf
    %514 = vmax.xlane.f32.xlu0 %v513
    %v515 = vpop.xlane.xlu0 %514
    %v516 = vsel %vm506, %v504, -inf
    %517 = vmax.xlane.f32.xlu0 %v516
    %v518 = vpop.xlane.xlu0 %517
    %v519 = vsub.f32 %v426, %v509
    %v520 = vsub.f32 %v452, %v512
    %v521 = vsub.f32 %v478, %v515
    %v522 = vsub.f32 %v504, %v518
    %v523 = vmul.f32 %v519, 1.442695
    %v524 = vpow.pop %v523
    %v525 = vmul.f32 %v520, 1.442695
    %v526 = vpow.pop %v525
    %v527 = vmul.f32 %v521, 1.442695
    %v528 = vpow.pop %v527
    %v529 = vmul.f32 %v522, 1.442695
    %v530 = vpow.pop %v529
    %v531 = vsel %vm506, %v524, 0.0
    %532 = vadd.xlane.f32.xlu0 %v531
    %v533 = vpop.xlane.xlu0 %532
    %v534 = vsel %vm506, %v526, 0.0
    %535 = vadd.xlane.f32.xlu0 %v534
    %v536 = vpop.xlane.xlu0 %535
    %v537 = vsel %vm506, %v528, 0.0
    %538 = vadd.xlane.f32.xlu0 %v537
    %v539 = vpop.xlane.xlu0 %538
    %v540 = vsel %vm506, %v530, 0.0
    %541 = vadd.xlane.f32.xlu0 %v540
    %v542 = vpop.xlane.xlu0 %541
    %v543 = vrcp.pop %v533
    %v544 = vrcp.pop %v536
    %v545 = vrcp.pop %v539
    %v546 = vrcp.pop %v542
    %v547 = vmul.f32 %v524, %v543
    %v548 = vmul.f32 %v526, %v544
    %v549 = vmul.f32 %v528, %v545
    %v550 = vmul.f32 %v530, %v546
    %551 = vrot.lane.b32.xlu0 %v384, 64
    %v552 = vpop.permute.xlu0 %551
    %v555 = vsel %vm506, %v547, 0
    %557 = vmatpush.msra.mxu0 0.0
    %558 = vmatpush.msra.mxu0 0.0
    %559 = vmatpush.msra.mxu0 0.0
    %560 = vmatpush.msra.mxu0 0.0
    %561 = vmatpush.msra.mxu0 0.0
    %562 = vmatpush.msra.mxu0 0.0
    %563 = vmatpush.msra.mxu0 0.0
    %564 = vmatpush.msra.mxu0 0.0
    %565 = vmatpush.msra.mxu0 0.0
    %566 = vmatpush.msra.mxu0 0.0
    %567 = vmatpush.msra.mxu0 0.0
    %568 = vmatpush.msra.mxu0 0.0
    %569 = vmatpush.msra.mxu0 0.0
    %570 = vmatpush.msra.mxu0 0.0
    %571 = vmatpush.msra.mxu0 0.0
    %572 = vmatpush.msra.mxu0 %v552
    %573 = vmatmul.f32.gmra.mxu0 %v555
    %v574 = vpop.f32.mrf.mxu0
    %v575 = vadd.f32 0.0, %v574
    %576 = vdwg.mxu0
    %577 = vrot.lane.b32.xlu0 %v387, 64
    %v578 = vpop.permute.xlu0 %577
    %v581 = vsel %vm506, %v548, 0
    %583 = vmatpush.msra.mxu0 0.0
    %584 = vmatpush.msra.mxu0 0.0
    %585 = vmatpush.msra.mxu0 0.0
    %586 = vmatpush.msra.mxu0 0.0
    %587 = vmatpush.msra.mxu0 0.0
    %588 = vmatpush.msra.mxu0 0.0
    %589 = vmatpush.msra.mxu0 0.0
    %590 = vmatpush.msra.mxu0 0.0
    %591 = vmatpush.msra.mxu0 0.0
    %592 = vmatpush.msra.mxu0 0.0
    %593 = vmatpush.msra.mxu0 0.0
    %594 = vmatpush.msra.mxu0 0.0
    %595 = vmatpush.msra.mxu0 0.0
    %596 = vmatpush.msra.mxu0 0.0
    %597 = vmatpush.msra.mxu0 0.0
    %598 = vmatpush.msra.mxu0 %v578
    %599 = vmatmul.f32.gmra.mxu0 %v581
    %v600 = vpop.f32.mrf.mxu0
    %v601 = vadd.f32 0.0, %v600
    %602 = vdwg.mxu0
    %603 = vrot.lane.b32.xlu0 %v392, 64
    %v604 = vpop.permute.xlu0 %603
    %v607 = vsel %vm506, %v549, 0
    %609 = vmatpush.msra.mxu0 0.0
    %610 = vmatpush.msra.mxu0 0.0
    %611 = vmatpush.msra.mxu0 0.0
    %612 = vmatpush.msra.mxu0 0.0
    %613 = vmatpush.msra.mxu0 0.0
    %614 = vmatpush.msra.mxu0 0.0
    %615 = vmatpush.msra.mxu0 0.0
    %616 = vmatpush.msra.mxu0 0.0
    %617 = vmatpush.msra.mxu0 0.0
    %618 = vmatpush.msra.mxu0 0.0
    %619 = vmatpush.msra.mxu0 0.0
    %620 = vmatpush.msra.mxu0 0.0
    %621 = vmatpush.msra.mxu0 0.0
    %622 = vmatpush.msra.mxu0 0.0
    %623 = vmatpush.msra.mxu0 0.0
    %624 = vmatpush.msra.mxu0 %v604
    %625 = vmatmul.f32.gmra.mxu0 %v607
    %v626 = vpop.f32.mrf.mxu0
    %v627 = vadd.f32 0.0, %v626
    %628 = vdwg.mxu0
    %629 = vrot.lane.b32.xlu0 %v394, 64
    %v630 = vpop.permute.xlu0 %629
    %v633 = vsel %vm506, %v550, 0
    %635 = vmatpush.msra.mxu0 0.0
    %636 = vmatpush.msra.mxu0 0.0
    %637 = vmatpush.msra.mxu0 0.0
    %638 = vmatpush.msra.mxu0 0.0
    %639 = vmatpush.msra.mxu0 0.0
    %640 = vmatpush.msra.mxu0 0.0
    %641 = vmatpush.msra.mxu0 0.0
    %642 = vmatpush.msra.mxu0 0.0
    %643 = vmatpush.msra.mxu0 0.0
    %644 = vmatpush.msra.mxu0 0.0
    %645 = vmatpush.msra.mxu0 0.0
    %646 = vmatpush.msra.mxu0 0.0
    %647 = vmatpush.msra.mxu0 0.0
    %648 = vmatpush.msra.mxu0 0.0
    %649 = vmatpush.msra.mxu0 0.0
    %650 = vmatpush.msra.mxu0 %v630
    %651 = vmatmul.f32.gmra.mxu0 %v633
    %v652 = vpop.f32.mrf.mxu0
    %v653 = vadd.f32 0.0, %v652
    %654 = vdwg.mxu0
    %657 = vrot.lane.b32.xlu0 %v627, 16
    %v658 = vpop.permute.xlu0 %657
    %659 = vrot.lane.b32.xlu0 %v653, 16
    %v660 = vpop.permute.xlu0 %659
    %v663 = vsel %vm403, %v575, %v658
    %v664 = vsel %vm403, %v601, %v660
    %v665 = vld [vmem:[%s6] sm:$0xff]
    %v666 = vld [vmem:[%s6 + $0x8] sm:$0xff]
    %v667 = vld [vmem:[%s6 + $0x10] sm:$0xff]
    %v668 = vld [vmem:[%s6 + $0x18] sm:$0xff]
    %v669 = vld [vmem:[#allocation11] sm:$0x1]
    %v671 = vperm.slane %v669, 0
    %v674 = vsel %vm288, %v663, 0
    %v677 = vsel %vm288, %v664, 0
    %679 = vmatpush.msra.mxu0 0.0
    %680 = vmatpush.msra.mxu0 0.0
    %681 = vmatpush.msra.mxu0 0.0
    %682 = vmatpush.msra.mxu0 0.0
    %683 = vmatpush.msra.mxu0 0.0
    %684 = vmatpush.msra.mxu0 0.0
    %685 = vmatpush.msra.mxu0 0.0
    %686 = vmatpush.msra.mxu0 0.0
    %687 = vmatpush.msra.mxu0 0.0
    %688 = vmatpush.msra.mxu0 0.0
    %689 = vmatpush.msra.mxu0 0.0
    %690 = vmatpush.msra.mxu0 0.0
    %691 = vmatpush.msra.mxu0 %v668
    %692 = vmatpush.msra.mxu0 %v667
    %693 = vmatpush.msra.mxu0 %v666
    %694 = vmatpush.msra.mxu0 %v665
    %695 = vmatmul.f32.gmra.mxu0 %v674
    %v696 = vpop.f32.mrf.mxu0
    %v697 = vadd.f32 %v671, %v696
    %698 = vmatmul.f32.gmra.mxu0 %v677
    %v699 = vpop.f32.mrf.mxu0
    %v700 = vadd.f32 %v671, %v699
    %701 = vdwg.mxu0
    %v702 = vadd.f32 %v697, %v348
    %v703 = vadd.f32 %v700, %v349
    %v704 = vld [vmem:[#allocation13] sm:$0x1]
    %v705 = vld [vmem:[#allocation14] sm:$0x1]
    %v706 = vsel %vm288, %v702, 0.0
    %707 = vadd.xlane.f32.xlu0 %v706
    %v708 = vpop.xlane.xlu0 %707
    %v709 = vsel %vm288, %v703, 0.0
    %710 = vadd.xlane.f32.xlu0 %v709
    %v711 = vpop.xlane.xlu0 %710
    %v712 = vmul.f32 %v708, %v301
    %v713 = vmul.f32 %v711, %v301
    %v714 = vsub.f32 %v702, %v712
    %v715 = vsub.f32 %v703, %v713
    %v716 = vmul.f32 %v714, %v714
    %v717 = vmul.f32 %v715, %v715
    %v718 = vsel %vm288, %v716, 0.0
    %719 = vadd.xlane.f32.xlu0 %v718
    %v720 = vpop.xlane.xlu0 %719
    %v721 = vsel %vm288, %v717, 0.0
    %722 = vadd.xlane.f32.xlu0 %v721
    %v723 = vpop.xlane.xlu0 %722
    %v724 = vmul.f32 %v720, %v301
    %v725 = vmul.f32 %v723, %v301
    %v726 = vadd.f32 %v724, 1e-12
    %v727 = vadd.f32 %v725, 1e-12
    %v728 = vrsqrt.pop %v726
    %v729 = vmul.f32 %v728, %v726
    %v730 = vmul.f32 %v729, %v728
    %v731 = vmul.f32 0.5, %v730
    %v732 = vsub.f32 1.5, %v731
    %v733 = vmul.f32 %v728, %v732
    %vm734 = vweird.f32 %v726
    %vm735 = vweird.f32 %v728
    %vm736 = vmor %vm734, %vm735
    %v737 = vsel %vm736, %v728, %v733
    %v738 = vrsqrt.pop %v727
    %v739 = vmul.f32 %v738, %v727
    %v740 = vmul.f32 %v739, %v738
    %v741 = vmul.f32 0.5, %v740
    %v742 = vsub.f32 1.5, %v741
    %v743 = vmul.f32 %v738, %v742
    %vm744 = vweird.f32 %v727
    %vm745 = vweird.f32 %v738
    %vm746 = vmor %vm744, %vm745
    %v747 = vsel %vm746, %v738, %v743
    %v748 = vmul.f32 %v714, %v737
    %v749 = vmul.f32 %v715, %v747
    %v751 = vperm.slane %v704, 0
    %v753 = vmul.f32 %v748, %v751
    %v754 = vmul.f32 %v749, %v751
    %v756 = vperm.slane %v705, 0
    %v758 = vadd.f32 %v753, %v756
    %v759 = vadd.f32 %v754, %v756
    %v760 = vld [vmem:[%s10] sm:$0xff]
    %v761 = vld [vmem:[%s10 + $0x8] sm:$0xff]
    %v762 = vld [vmem:[%s10 + $0x10] sm:$0xff]
    %v763 = vld [vmem:[%s10 + $0x18] sm:$0xff]
    %v764 = vld [vmem:[#allocation16] sm:$0x1]
    %v766 = vperm.slane %v764, 0
    %v769 = vsel %vm288, %v758, 0
    %v772 = vsel %vm288, %v759, 0
    %774 = vmatpush.msra.mxu0 0.0
    %775 = vmatpush.msra.mxu0 0.0
    %776 = vmatpush.msra.mxu0 0.0
    %777 = vmatpush.msra.mxu0 0.0
    %778 = vmatpush.msra.mxu0 0.0
    %779 = vmatpush.msra.mxu0 0.0
    %780 = vmatpush.msra.mxu0 0.0
    %781 = vmatpush.msra.mxu0 0.0
    %782 = vmatpush.msra.mxu0 0.0
    %783 = vmatpush.msra.mxu0 0.0
    %784 = vmatpush.msra.mxu0 0.0
    %785 = vmatpush.msra.mxu0 0.0
    %786 = vmatpush.msra.mxu0 %v763
    %787 = vmatpush.msra.mxu0 %v762
    %788 = vmatpush.msra.mxu0 %v761
    %789 = vmatpush.msra.mxu0 %v760
    %790 = vmatmul.f32.gmra.mxu0 %v769
    %v791 = vpop.f32.mrf.mxu0
    %v792 = vadd.f32 %v766, %v791
    %793 = vmatmul.f32.gmra.mxu0 %v772
    %v794 = vpop.f32.mrf.mxu0
    %v795 = vadd.f32 %v766, %v794
    %796 = vdwg.mxu0
    %v797 = vmul.f32 %v792, %v792
    %v798 = vmul.f32 %v795, %v795
    %v799 = vmul.f32 %v792, %v797
    %v800 = vmul.f32 %v795, %v798
    %v801 = vmul.f32 %v799, 0.044715
    %v802 = vmul.f32 %v800, 0.044715
    %v803 = vadd.f32 %v792, %v801
    %v804 = vadd.f32 %v795, %v802
    %v805 = vmul.f32 %v803, 0.7978846
    %v806 = vmul.f32 %v804, 0.7978846
    %v807 = vtanh.pop %v805
    %v808 = vtanh.pop %v806
    %v809 = vadd.f32 %v807, 1.0
    %v810 = vadd.f32 %v808, 1.0
    %v811 = vmul.f32 %v809, 0.5
    %v812 = vmul.f32 %v810, 0.5
    %v813 = vmul.f32 %v792, %v811
    %v814 = vmul.f32 %v795, %v812
    %v815 = vld [vmem:[%s12] sm:$0xff]
    %v816 = vld [vmem:[%s12 + $0x8] sm:$0xff]
    %v817 = vld [vmem:[%s12 + $0x10] sm:$0xff]
    %v818 = vld [vmem:[%s12 + $0x18] sm:$0xff]
    %v819 = vld [vmem:[%s12 + $0x20] sm:$0xff]
    %v820 = vld [vmem:[%s12 + $0x28] sm:$0xff]
    %v821 = vld [vmem:[%s12 + $0x30] sm:$0xff]
    %v822 = vld [vmem:[%s12 + $0x38] sm:$0xff]
    %v823 = vld [vmem:[#allocation17] sm:$0x1]
    %v825 = vperm.slane %v823, 0
    %vm827 = vcmask 523264
    %v829 = vsel %vm827, %v813, 0
    %v832 = vsel %vm827, %v814, 0
    %834 = vmatpush.msra.mxu0 0.0
    %835 = vmatpush.msra.mxu0 0.0
    %836 = vmatpush.msra.mxu0 0.0
    %837 = vmatpush.msra.mxu0 0.0
    %838 = vmatpush.msra.mxu0 0.0
    %839 = vmatpush.msra.mxu0 0.0
    %840 = vmatpush.msra.mxu0 0.0
    %841 = vmatpush.msra.mxu0 0.0
    %842 = vmatpush.msra.mxu0 %v822
    %843 = vmatpush.msra.mxu0 %v821
    %844 = vmatpush.msra.mxu0 %v820
    %845 = vmatpush.msra.mxu0 %v819
    %846 = vmatpush.msra.mxu0 %v818
    %847 = vmatpush.msra.mxu0 %v817
    %848 = vmatpush.msra.mxu0 %v816
    %849 = vmatpush.msra.mxu0 %v815
    %850 = vmatmul.f32.gmra.mxu0 %v829
    %v851 = vpop.f32.mrf.mxu0
    %v852 = vadd.f32 %v825, %v851
    %853 = vmatmul.f32.gmra.mxu0 %v832
    %v854 = vpop.f32.mrf.mxu0
    %v855 = vadd.f32 %v825, %v854
    %856 = vdwg.mxu0
    %v857 = vadd.f32 %v852, %v758
    %v858 = vadd.f32 %v855, %v759
    %v859 = vld [vmem:[#allocation19] sm:$0x1]
    %v860 = vld [vmem:[#allocation20] sm:$0x1]
    %v861 = vsel %vm288, %v857, 0.0
    %862 = vadd.xlane.f32.xlu0 %v861
    %v863 = vpop.xlane.xlu0 %862
    %v864 = vsel %vm288, %v858, 0.0
    %865 = vadd.xlane.f32.xlu0 %v864
    %v866 = vpop.xlane.xlu0 %865
    %v867 = vmul.f32 %v863, %v301
    %v868 = vmul.f32 %v866, %v301
    %v869 = vsub.f32 %v857, %v867
    %v870 = vsub.f32 %v858, %v868
    %v871 = vmul.f32 %v869, %v869
    %v872 = vmul.f32 %v870, %v870
    %v873 = vsel %vm288, %v871, 0.0
    %874 = vadd.xlane.f32.xlu0 %v873
    %v875 = vpop.xlane.xlu0 %874
    %v876 = vsel %vm288, %v872, 0.0
    %877 = vadd.xlane.f32.xlu0 %v876
    %v878 = vpop.xlane.xlu0 %877
    %v879 = vmul.f32 %v875, %v301
    %v880 = vmul.f32 %v878, %v301
    %v881 = vadd.f32 %v879, 1e-12
    %v882 = vadd.f32 %v880, 1e-12
    %v883 = vrsqrt.pop %v881
    %v884 = vmul.f32 %v883, %v881
    %v885 = vmul.f32 %v884, %v883
    %v886 = vmul.f32 0.5, %v885
    %v887 = vsub.f32 1.5, %v886
    %v888 = vmul.f32 %v883, %v887
    %vm889 = vweird.f32 %v881
    %vm890 = vweird.f32 %v883
    %vm891 = vmor %vm889, %vm890
    %v892 = vsel %vm891, %v883, %v888
    %v893 = vrsqrt.pop %v882
    %v894 = vmul.f32 %v893, %v882
    %v895 = vmul.f32 %v894, %v893
    %v896 = vmul.f32 0.5, %v895
    %v897 = vsub.f32 1.5, %v896
    %v898 = vmul.f32 %v893, %v897
    %vm899 = vweird.f32 %v882
    %vm900 = vweird.f32 %v893
    %vm901 = vmor %vm899, %vm900
    %v902 = vsel %vm901, %v893, %v898
    %v903 = vmul.f32 %v869, %v892
    %v904 = vmul.f32 %v870, %v902
    %v906 = vperm.slane %v859, 0
    %v908 = vmul.f32 %v903, %v906
    %v909 = vmul.f32 %v904, %v906
    %v911 = vperm.slane %v860, 0
    %v913 = vadd.f32 %v908, %v911
    %v914 = vadd.f32 %v909, %v911
    %s915 = scalar_lea.vmem %s4, 32
    %v916 = vld [vmem:[%s915] sm:$0xff]
    %v917 = vld [vmem:[%s915 + $0x8] sm:$0xff]
    %v918 = vld [vmem:[%s915 + $0x10] sm:$0xff]
    %v919 = vld [vmem:[%s915 + $0x18] sm:$0xff]
    %s920 = scalar_lea.vmem [#allocation10], 1
    %v921 = vld [vmem:[%s920] sm:$0x1]
    %v923 = vperm.slane %v921, 0
    %v926 = vsel %vm288, %v913, 0
    %v929 = vsel %vm288, %v914, 0
    %931 = vmatpush.msra.mxu0 0.0
    %932 = vmatpush.msra.mxu0 0.0
    %933 = vmatpush.msra.mxu0 0.0
    %934 = vmatpush.msra.mxu0 0.0
    %935 = vmatpush.msra.mxu0 0.0
    %936 = vmatpush.msra.mxu0 0.0
    %937 = vmatpush.msra.mxu0 0.0
    %938 = vmatpush.msra.mxu0 0.0
    %939 = vmatpush.msra.mxu0 0.0
    %940 = vmatpush.msra.mxu0 0.0
    %941 = vmatpush.msra.mxu0 0.0
    %942 = vmatpush.msra.mxu0 0.0
    %943 = vmatpush.msra.mxu0 %v919
    %944 = vmatpush.msra.mxu0 %v918
    %945 = vmatpush.msra.mxu0 %v917
    %946 = vmatpush.msra.mxu0 %v916
    %947 = vmatmul.f32.gmra.mxu0 %v926
    %v948 = vpop.f32.mrf.mxu0
    %v949 = vadd.f32 %v923, %v948
    %950 = vmatmul.f32.gmra.mxu0 %v929
    %v951 = vpop.f32.mrf.mxu0
    %v952 = vadd.f32 %v923, %v951
    %953 = vdwg.mxu0
    %956 = vrot.lane.b32.xlu0 %v949, 112
    %v957 = vpop.permute.xlu0 %956
    %958 = vrot.lane.b32.xlu0 %v952, 112
    %v959 = vpop.permute.xlu0 %958
    %960 = vrot.lane.b32.xlu0 %v949, 96
    %v961 = vpop.permute.xlu0 %960
    %v962 = vsel %vm403, %v949, 0
    %v964 = vsel %vm403, %v961, 0
    %966 = vmatpush.xpose.msra.mxu0 0.0
    %967 = vmatpush.xpose.msra.mxu0 0.0
    %968 = vmatpush.xpose.msra.mxu0 0.0
    %969 = vmatpush.xpose.msra.mxu0 0.0
    %970 = vmatpush.xpose.msra.mxu0 0.0
    %971 = vmatpush.xpose.msra.mxu0 0.0
    %972 = vmatpush.xpose.msra.mxu0 0.0
    %973 = vmatpush.xpose.msra.mxu0 0.0
    %974 = vmatpush.xpose.msra.mxu0 0.0
    %975 = vmatpush.xpose.msra.mxu0 0.0
    %976 = vmatpush.xpose.msra.mxu0 0.0
    %977 = vmatpush.xpose.msra.mxu0 0.0
    %978 = vmatpush.xpose.msra.mxu0 0.0
    %979 = vmatpush.xpose.msra.mxu0 0.0
    %980 = vmatpush.xpose.msra.mxu0 0.0
    %981 = vmatpush.xpose.msra.mxu0 %v964
    %982 = vmatmul.f32.gmra.mxu0 %v962
    %v983 = vpop.f32.mrf.mxu0
    %v984 = vadd.f32 %v397, %v983
    %985 = vdwg.mxu0
    %986 = vrot.lane.b32.xlu0 %v952, 96
    %v987 = vpop.permute.xlu0 %986
    %v988 = vsel %vm403, %v952, 0
    %v990 = vsel %vm403, %v987, 0
    %992 = vmatpush.xpose.msra.mxu0 0.0
    %993 = vmatpush.xpose.msra.mxu0 0.0
    %994 = vmatpush.xpose.msra.mxu0 0.0
    %995 = vmatpush.xpose.msra.mxu0 0.0
    %996 = vmatpush.xpose.msra.mxu0 0.0
    %997 = vmatpush.xpose.msra.mxu0 0.0
    %998 = vmatpush.xpose.msra.mxu0 0.0
    %999 = vmatpush.xpose.msra.mxu0 0.0
    %1000 = vmatpush.xpose.msra.mxu0 0.0
    %1001 = vmatpush.xpose.msra.mxu0 0.0
    %1002 = vmatpush.xpose.msra.mxu0 0.0
    %1003 = vmatpush.xpose.msra.mxu0 0.0
    %1004 = vmatpush.xpose.msra.mxu0 0.0
    %1005 = vmatpush.xpose.msra.mxu0 0.0
    %1006 = vmatpush.xpose.msra.mxu0 0.0
    %1007 = vmatpush.xpose.msra.mxu0 %v990
    %1008 = vmatmul.f32.gmra.mxu0 %v988
    %v1009 = vpop.f32.mrf.mxu0
    %v1010 = vadd.f32 %v398, %v1009
    %1011 = vdwg.mxu0
    %1012 = vrot.lane.b32.xlu0 %v957, 96
    %v1013 = vpop.permute.xlu0 %1012
    %v1014 = vsel %vm403, %v957, 0
    %v1016 = vsel %vm403, %v1013, 0
    %1018 = vmatpush.xpose.msra.mxu0 0.0
    %1019 = vmatpush.xpose.msra.mxu0 0.0
    %1020 = vmatpush.xpose.msra.mxu0 0.0
    %1021 = vmatpush.xpose.msra.mxu0 0.0
    %1022 = vmatpush.xpose.msra.mxu0 0.0
    %1023 = vmatpush.xpose.msra.mxu0 0.0
    %1024 = vmatpush.xpose.msra.mxu0 0.0
    %1025 = vmatpush.xpose.msra.mxu0 0.0
    %1026 = vmatpush.xpose.msra.mxu0 0.0
    %1027 = vmatpush.xpose.msra.mxu0 0.0
    %1028 = vmatpush.xpose.msra.mxu0 0.0
    %1029 = vmatpush.xpose.msra.mxu0 0.0
    %1030 = vmatpush.xpose.msra.mxu0 0.0
    %1031 = vmatpush.xpose.msra.mxu0 0.0
    %1032 = vmatpush.xpose.msra.mxu0 0.0
    %1033 = vmatpush.xpose.msra.mxu0 %v1016
    %1034 = vmatmul.f32.gmra.mxu0 %v1014
    %v1035 = vpop.f32.mrf.mxu0
    %v1036 = vadd.f32 %v397, %v1035
    %1037 = vdwg.mxu0
    %1038 = vrot.lane.b32.xlu0 %v959, 96
    %v1039 = vpop.permute.xlu0 %1038
    %v1040 = vsel %vm403, %v959, 0
    %v1042 = vsel %vm403, %v1039, 0
    %1044 = vmatpush.xpose.msra.mxu0 0.0
    %1045 = vmatpush.xpose.msra.mxu0 0.0
    %1046 = vmatpush.xpose.msra.mxu0 0.0
    %1047 = vmatpush.xpose.msra.mxu0 0.0
    %1048 = vmatpush.xpose.msra.mxu0 0.0
    %1049 = vmatpush.xpose.msra.mxu0 0.0
    %1050 = vmatpush.xpose.msra.mxu0 0.0
    %1051 = vmatpush.xpose.msra.mxu0 0.0
    %1052 = vmatpush.xpose.msra.mxu0 0.0
    %1053 = vmatpush.xpose.msra.mxu0 0.0
    %1054 = vmatpush.xpose.msra.mxu0 0.0
    %1055 = vmatpush.xpose.msra.mxu0 0.0
    %1056 = vmatpush.xpose.msra.mxu0 0.0
    %1057 = vmatpush.xpose.msra.mxu0 0.0
    %1058 = vmatpush.xpose.msra.mxu0 0.0
    %1059 = vmatpush.xpose.msra.mxu0 %v1042
    %1060 = vmatmul.f32.gmra.mxu0 %v1040
    %v1061 = vpop.f32.mrf.mxu0
    %v1062 = vadd.f32 %v398, %v1061
    %1063 = vdwg.mxu0
    %v1064 = vsel %vm506, %v984, -inf
    %1065 = vmax.xlane.f32.xlu0 %v1064
    %v1066 = vpop.xlane.xlu0 %1065
    %v1067 = vsel %vm506, %v1010, -inf
    %1068 = vmax.xlane.f32.xlu0 %v1067
    %v1069 = vpop.xlane.xlu0 %1068
    %v1070 = vsel %vm506, %v1036, -inf
    %1071 = vmax.xlane.f32.xlu0 %v1070
    %v1072 = vpop.xlane.xlu0 %1071
    %v1073 = vsel %vm506, %v1062, -inf
    %1074 = vmax.xlane.f32.xlu0 %v1073
    %v1075 = vpop.xlane.xlu0 %1074
    %v1076 = vsub.f32 %v984, %v1066
    %v1077 = vsub.f32 %v1010, %v1069
    %v1078 = vsub.f32 %v1036, %v1072
    %v1079 = vsub.f32 %v1062, %v1075
    %v1080 = vmul.f32 %v1076, 1.442695
    %v1081 = vpow.pop %v1080
    %v1082 = vmul.f32 %v1077, 1.442695
    %v1083 = vpow.pop %v1082
    %v1084 = vmul.f32 %v1078, 1.442695
    %v1085 = vpow.pop %v1084
    %v1086 = vmul.f32 %v1079, 1.442695
    %v1087 = vpow.pop %v1086
    %v1088 = vsel %vm506, %v1081, 0.0
    %1089 = vadd.xlane.f32.xlu0 %v1088
    %v1090 = vpop.xlane.xlu0 %1089
    %v1091 = vsel %vm506, %v1083, 0.0
    %1092 = vadd.xlane.f32.xlu0 %v1091
    %v1093 = vpop.xlane.xlu0 %1092
    %v1094 = vsel %vm506, %v1085, 0.0
    %1095 = vadd.xlane.f32.xlu0 %v1094
    %v1096 = vpop.xlane.xlu0 %1095
    %v1097 = vsel %vm506, %v1087, 0.0
    %1098 = vadd.xlane.f32.xlu0 %v1097
    %v1099 = vpop.xlane.xlu0 %1098
    %v1100 = vrcp.pop %v1090
    %v1101 = vrcp.pop %v1093
    %v1102 = vrcp.pop %v1096
    %v1103 = vrcp.pop %v1099
    %v1104 = vmul.f32 %v1081, %v1100
    %v1105 = vmul.f32 %v1083, %v1101
    %v1106 = vmul.f32 %v1085, %v1102
    %v1107 = vmul.f32 %v1087, %v1103
    %1108 = vrot.lane.b32.xlu0 %v949, 64
    %v1109 = vpop.permute.xlu0 %1108
    %v1112 = vsel %vm506, %v1104, 0
    %1114 = vmatpush.msra.mxu0 0.0
    %1115 = vmatpush.msra.mxu0 0.0
    %1116 = vmatpush.msra.mxu0 0.0
    %1117 = vmatpush.msra.mxu0 0.0
    %1118 = vmatpush.msra.mxu0 0.0
    %1119 = vmatpush.msra.mxu0 0.0
    %1120 = vmatpush.msra.mxu0 0.0
    %1121 = vmatpush.msra.mxu0 0.0
    %1122 = vmatpush.msra.mxu0 0.0
    %1123 = vmatpush.msra.mxu0 0.0
    %1124 = vmatpush.msra.mxu0 0.0
    %1125 = vmatpush.msra.mxu0 0.0
    %1126 = vmatpush.msra.mxu0 0.0
    %1127 = vmatpush.msra.mxu0 0.0
    %1128 = vmatpush.msra.mxu0 0.0
    %1129 = vmatpush.msra.mxu0 %v1109
    %1130 = vmatmul.f32.gmra.mxu0 %v1112
    %v1131 = vpop.f32.mrf.mxu0
    %v1132 = vadd.f32 0.0, %v1131
    %1133 = vdwg.mxu0
    %1134 = vrot.lane.b32.xlu0 %v952, 64
    %v1135 = vpop.permute.xlu0 %1134
    %v1138 = vsel %vm506, %v1105, 0
    %1140 = vmatpush.msra.mxu0 0.0
    %1141 = vmatpush.msra.mxu0 0.0
    %1142 = vmatpush.msra.mxu0 0.0
    %1143 = vmatpush.msra.mxu0 0.0
    %1144 = vmatpush.msra.mxu0 0.0
    %1145 = vmatpush.msra.mxu0 0.0
    %1146 = vmatpush.msra.mxu0 0.0
    %1147 = vmatpush.msra.mxu0 0.0
    %1148 = vmatpush.msra.mxu0 0.0
    %1149 = vmatpush.msra.mxu0 0.0
    %1150 = vmatpush.msra.mxu0 0.0
    %1151 = vmatpush.msra.mxu0 0.0
    %1152 = vmatpush.msra.mxu0 0.0
    %1153 = vmatpush.msra.mxu0 0.0
    %1154 = vmatpush.msra.mxu0 0.0
    %1155 = vmatpush.msra.mxu0 %v1135
    %1156 = vmatmul.f32.gmra.mxu0 %v1138
    %v1157 = vpop.f32.mrf.mxu0
    %v1158 = vadd.f32 0.0, %v1157
    %1159 = vdwg.mxu0
    %1160 = vrot.lane.b32.xlu0 %v957, 64
    %v1161 = vpop.permute.xlu0 %1160
    %v1164 = vsel %vm506, %v1106, 0
    %1166 = vmatpush.msra.mxu0 0.0
    %1167 = vmatpush.msra.mxu0 0.0
    %1168 = vmatpush.msra.mxu0 0.0
    %1169 = vmatpush.msra.mxu0 0.0
    %1170 = vmatpush.msra.mxu0 0.0
    %1171 = vmatpush.msra.mxu0 0.0
    %1172 = vmatpush.msra.mxu0 0.0
    %1173 = vmatpush.msra.mxu0 0.0
    %1174 = vmatpush.msra.mxu0 0.0
    %1175 = vmatpush.msra.mxu0 0.0
    %1176 = vmatpush.msra.mxu0 0.0
    %1177 = vmatpush.msra.mxu0 0.0
    %1178 = vmatpush.msra.mxu0 0.0
    %1179 = vmatpush.msra.mxu0 0.0
    %1180 = vmatpush.msra.mxu0 0.0
    %1181 = vmatpush.msra.mxu0 %v1161
    %1182 = vmatmul.f32.gmra.mxu0 %v1164
    %v1183 = vpop.f32.mrf.mxu0
    %v1184 = vadd.f32 0.0, %v1183
    %1185 = vdwg.mxu0
    %1186 = vrot.lane.b32.xlu0 %v959, 64
    %v1187 = vpop.permute.xlu0 %1186
    %v1190 = vsel %vm506, %v1107, 0
    %1192 = vmatpush.msra.mxu0 0.0
    %1193 = vmatpush.msra.mxu0 0.0
    %1194 = vmatpush.msra.mxu0 0.0
    %1195 = vmatpush.msra.mxu0 0.0
    %1196 = vmatpush.msra.mxu0 0.0
    %1197 = vmatpush.msra.mxu0 0.0
    %1198 = vmatpush.msra.mxu0 0.0
    %1199 = vmatpush.msra.mxu0 0.0
    %1200 = vmatpush.msra.mxu0 0.0
    %1201 = vmatpush.msra.mxu0 0.0
    %1202 = vmatpush.msra.mxu0 0.0
    %1203 = vmatpush.msra.mxu0 0.0
    %1204 = vmatpush.msra.mxu0 0.0
    %1205 = vmatpush.msra.mxu0 0.0
    %1206 = vmatpush.msra.mxu0 0.0
    %1207 = vmatpush.msra.mxu0 %v1187
    %1208 = vmatmul.f32.gmra.mxu0 %v1190
    %v1209 = vpop.f32.mrf.mxu0
    %v1210 = vadd.f32 0.0, %v1209
    %1211 = vdwg.mxu0
    %1214 = vrot.lane.b32.xlu0 %v1184, 16
    %v1215 = vpop.permute.xlu0 %1214
    %1216 = vrot.lane.b32.xlu0 %v1210, 16
    %v1217 = vpop.permute.xlu0 %1216
    %v1220 = vsel %vm403, %v1132, %v1215
    %v1221 = vsel %vm403, %v1158, %v1217
    %s1222 = scalar_lea.vmem %s6, 32
    %v1223 = vld [vmem:[%s1222] sm:$0xff]
    %v1224 = vld [vmem:[%s1222 + $0x8] sm:$0xff]
    %v1225 = vld [vmem:[%s1222 + $0x10] sm:$0xff]
    %v1226 = vld [vmem:[%s1222 + $0x18] sm:$0xff]
    %s1227 = scalar_lea.vmem [#allocation11], 1
    %v1228 = vld [vmem:[%s1227] sm:$0x1]
    %v1230 = vperm.slane %v1228, 0
    %v1233 = vsel %vm288, %v1220, 0
    %v1236 = vsel %vm288, %v1221, 0
    %1238 = vmatpush.msra.mxu0 0.0
    %1239 = vmatpush.msra.mxu0 0.0
    %1240 = vmatpush.msra.mxu0 0.0
    %1241 = vmatpush.msra.mxu0 0.0
    %1242 = vmatpush.msra.mxu0 0.0
    %1243 = vmatpush.msra.mxu0 0.0
    %1244 = vmatpush.msra.mxu0 0.0
    %1245 = vmatpush.msra.mxu0 0.0
    %1246 = vmatpush.msra.mxu0 0.0
    %1247 = vmatpush.msra.mxu0 0.0
    %1248 = vmatpush.msra.mxu0 0.0
    %1249 = vmatpush.msra.mxu0 0.0
    %1250 = vmatpush.msra.mxu0 %v1226
    %1251 = vmatpush.msra.mxu0 %v1225
    %1252 = vmatpush.msra.mxu0 %v1224
    %1253 = vmatpush.msra.mxu0 %v1223
    %1254 = vmatmul.f32.gmra.mxu0 %v1233
    %v1255 = vpop.f32.mrf.mxu0
    %v1256 = vadd.f32 %v1230, %v1255
    %1257 = vmatmul.f32.gmra.mxu0 %v1236
    %v1258 = vpop.f32.mrf.mxu0
    %v1259 = vadd.f32 %v1230, %v1258
    %1260 = vdwg.mxu0
    %v1261 = vadd.f32 %v1256, %v913
    %v1262 = vadd.f32 %v1259, %v914
    %s1263 = scalar_lea.vmem [#allocation13], 1
    %v1264 = vld [vmem:[%s1263] sm:$0x1]
    %s1265 = scalar_lea.vmem [#allocation14], 1
    %v1266 = vld [vmem:[%s1265] sm:$0x1]
    %v1267 = vsel %vm288, %v1261, 0.0
    %1268 = vadd.xlane.f32.xlu0 %v1267
    %v1269 = vpop.xlane.xlu0 %1268
    %v1270 = vsel %vm288, %v1262, 0.0
    %1271 = vadd.xlane.f32.xlu0 %v1270
    %v1272 = vpop.xlane.xlu0 %1271
    %v1273 = vmul.f32 %v1269, %v301
    %v1274 = vmul.f32 %v1272, %v301
    %v1275 = vsub.f32 %v1261, %v1273
    %v1276 = vsub.f32 %v1262, %v1274
    %v1277 = vmul.f32 %v1275, %v1275
    %v1278 = vmul.f32 %v1276, %v1276
    %v1279 = vsel %vm288, %v1277, 0.0
    %1280 = vadd.xlane.f32.xlu0 %v1279
    %v1281 = vpop.xlane.xlu0 %1280
    %v1282 = vsel %vm288, %v1278, 0.0
    %1283 = vadd.xlane.f32.xlu0 %v1282
    %v1284 = vpop.xlane.xlu0 %1283
    %v1285 = vmul.f32 %v1281, %v301
    %v1286 = vmul.f32 %v1284, %v301
    %v1287 = vadd.f32 %v1285, 1e-12
    %v1288 = vadd.f32 %v1286, 1e-12
    %v1289 = vrsqrt.pop %v1287
    %v1290 = vmul.f32 %v1289, %v1287
    %v1291 = vmul.f32 %v1290, %v1289
    %v1292 = vmul.f32 0.5, %v1291
    %v1293 = vsub.f32 1.5, %v1292
    %v1294 = vmul.f32 %v1289, %v1293
    %vm1295 = vweird.f32 %v1287
    %vm1296 = vweird.f32 %v1289
    %vm1297 = vmor %vm1295, %vm1296
    %v1298 = vsel %vm1297, %v1289, %v1294
    %v1299 = vrsqrt.pop %v1288
    %v1300 = vmul.f32 %v1299, %v1288
    %v1301 = vmul.f32 %v1300, %v1299
    %v1302 = vmul.f32 0.5, %v1301
    %v1303 = vsub.f32 1.5, %v1302
    %v1304 = vmul.f32 %v1299, %v1303
    %vm1305 = vweird.f32 %v1288
    %vm1306 = vweird.f32 %v1299
    %vm1307 = vmor %vm1305, %vm1306
    %v1308 = vsel %vm1307, %v1299, %v1304
    %v1309 = vmul.f32 %v1275, %v1298
    %v1310 = vmul.f32 %v1276, %v1308
    %v1312 = vperm.slane %v1264, 0
    %v1314 = vmul.f32 %v1309, %v1312
    %v1315 = vmul.f32 %v1310, %v1312
    %v1317 = vperm.slane %v1266, 0
    %v1319 = vadd.f32 %v1314, %v1317
    %v1320 = vadd.f32 %v1315, %v1317
    %s1321 = scalar_lea.vmem %s10, 32
    %v1322 = vld [vmem:[%s1321] sm:$0xff]
    %v1323 = vld [vmem:[%s1321 + $0x8] sm:$0xff]
    %v1324 = vld [vmem:[%s1321 + $0x10] sm:$0xff]
    %v1325 = vld [vmem:[%s1321 + $0x18] sm:$0xff]
    %s1326 = scalar_lea.vmem [#allocation16], 1
    %v1327 = vld [vmem:[%s1326] sm:$0x1]
    %v1329 = vperm.slane %v1327, 0
    %v1332 = vsel %vm288, %v1319, 0
    %v1335 = vsel %vm288, %v1320, 0
    %1337 = vmatpush.msra.mxu0 0.0
    %1338 = vmatpush.msra.mxu0 0.0
    %1339 = vmatpush.msra.mxu0 0.0
    %1340 = vmatpush.msra.mxu0 0.0
    %1341 = vmatpush.msra.mxu0 0.0
    %1342 = vmatpush.msra.mxu0 0.0
    %1343 = vmatpush.msra.mxu0 0.0
    %1344 = vmatpush.msra.mxu0 0.0
    %1345 = vmatpush.msra.mxu0 0.0
    %1346 = vmatpush.msra.mxu0 0.0
    %1347 = vmatpush.msra.mxu0 0.0
    %1348 = vmatpush.msra.mxu0 0.0
    %1349 = vmatpush.msra.mxu0 %v1325
    %1350 = vmatpush.msra.mxu0 %v1324
    %1351 = vmatpush.msra.mxu0 %v1323
    %1352 = vmatpush.msra.mxu0 %v1322
    %1353 = vmatmul.f32.gmra.mxu0 %v1332
    %v1354 = vpop.f32.mrf.mxu0
    %v1355 = vadd.f32 %v1329, %v1354
    %1356 = vmatmul.f32.gmra.mxu0 %v1335
    %v1357 = vpop.f32.mrf.mxu0
    %v1358 = vadd.f32 %v1329, %v1357
    %1359 = vdwg.mxu0
    %v1360 = vmul.f32 %v1355, %v1355
    %v1361 = vmul.f32 %v1358, %v1358
    %v1362 = vmul.f32 %v1355, %v1360
    %v1363 = vmul.f32 %v1358, %v1361
    %v1364 = vmul.f32 %v1362, 0.044715
    %v1365 = vmul.f32 %v1363, 0.044715
    %v1366 = vadd.f32 %v1355, %v1364
    %v1367 = vadd.f32 %v1358, %v1365
    %v1368 = vmul.f32 %v1366, 0.7978846
    %v1369 = vmul.f32 %v1367, 0.7978846
    %v1370 = vtanh.pop %v1368
    %v1371 = vtanh.pop %v1369
    %v1372 = vadd.f32 %v1370, 1.0
    %v1373 = vadd.f32 %v1371, 1.0
    %v1374 = vmul.f32 %v1372, 0.5
    %v1375 = vmul.f32 %v1373, 0.5
    %v1376 = vmul.f32 %v1355, %v1374
    %v1377 = vmul.f32 %v1358, %v1375
    %s1378 = scalar_lea.vmem %s12, 64
    %v1379 = vld [vmem:[%s1378] sm:$0xff]
    %v1380 = vld [vmem:[%s1378 + $0x8] sm:$0xff]
    %v1381 = vld [vmem:[%s1378 + $0x10] sm:$0xff]
    %v1382 = vld [vmem:[%s1378 + $0x18] sm:$0xff]
    %v1383 = vld [vmem:[%s1378 + $0x20] sm:$0xff]
    %v1384 = vld [vmem:[%s1378 + $0x28] sm:$0xff]
    %v1385 = vld [vmem:[%s1378 + $0x30] sm:$0xff]
    %v1386 = vld [vmem:[%s1378 + $0x38] sm:$0xff]
    %s1387 = scalar_lea.vmem [#allocation17], 1
    %v1388 = vld [vmem:[%s1387] sm:$0x1]
    %v1390 = vperm.slane %v1388, 0
    %v1393 = vsel %vm827, %v1376, 0
    %v1396 = vsel %vm827, %v1377, 0
    %1398 = vmatpush.msra.mxu0 0.0
    %1399 = vmatpush.msra.mxu0 0.0
    %1400 = vmatpush.msra.mxu0 0.0
    %1401 = vmatpush.msra.mxu0 0.0
    %1402 = vmatpush.msra.mxu0 0.0
    %1403 = vmatpush.msra.mxu0 0.0
    %1404 = vmatpush.msra.mxu0 0.0
    %1405 = vmatpush.msra.mxu0 0.0
    %1406 = vmatpush.msra.mxu0 %v1386
    %1407 = vmatpush.msra.mxu0 %v1385
    %1408 = vmatpush.msra.mxu0 %v1384
    %1409 = vmatpush.msra.mxu0 %v1383
    %1410 = vmatpush.msra.mxu0 %v1382
    %1411 = vmatpush.msra.mxu0 %v1381
    %1412 = vmatpush.msra.mxu0 %v1380
    %1413 = vmatpush.msra.mxu0 %v1379
    %1414 = vmatmul.f32.gmra.mxu0 %v1393
    %v1415 = vpop.f32.mrf.mxu0
    %v1416 = vadd.f32 %v1390, %v1415
    %1417 = vmatmul.f32.gmra.mxu0 %v1396
    %v1418 = vpop.f32.mrf.mxu0
    %v1419 = vadd.f32 %v1390, %v1418
    %1420 = vdwg.mxu0
    %v1421 = vadd.f32 %v1416, %v1319
    %v1422 = vadd.f32 %v1419, %v1320
    %s1423 = scalar_lea.vmem [#allocation19], 1
    %v1424 = vld [vmem:[%s1423] sm:$0x1]
    %s1425 = scalar_lea.vmem [#allocation20], 1
    %v1426 = vld [vmem:[%s1425] sm:$0x1]
    %v1427 = vsel %vm288, %v1421, 0.0
    %1428 = vadd.xlane.f32.xlu0 %v1427
    %v1429 = vpop.xlane.xlu0 %1428
    %v1430 = vsel %vm288, %v1422, 0.0
    %1431 = vadd.xlane.f32.xlu0 %v1430
    %v1432 = vpop.xlane.xlu0 %1431
    %v1433 = vmul.f32 %v1429, %v301
    %v1434 = vmul.f32 %v1432, %v301
    %v1435 = vsub.f32 %v1421, %v1433
    %v1436 = vsub.f32 %v1422, %v1434
    %v1437 = vmul.f32 %v1435, %v1435
    %v1438 = vmul.f32 %v1436, %v1436
    %v1439 = vsel %vm288, %v1437, 0.0
    %1440 = vadd.xlane.f32.xlu0 %v1439
    %v1441 = vpop.xlane.xlu0 %1440
    %v1442 = vsel %vm288, %v1438, 0.0
    %1443 = vadd.xlane.f32.xlu0 %v1442
    %v1444 = vpop.xlane.xlu0 %1443
    %v1445 = vmul.f32 %v1441, %v301
    %v1446 = vmul.f32 %v1444, %v301
    %v1447 = vadd.f32 %v1445, 1e-12
    %v1448 = vadd.f32 %v1446, 1e-12
    %v1449 = vrsqrt.pop %v1447
    %v1450 = vmul.f32 %v1449, %v1447
    %v1451 = vmul.f32 %v1450, %v1449
    %v1452 = vmul.f32 0.5, %v1451
    %v1453 = vsub.f32 1.5, %v1452
    %v1454 = vmul.f32 %v1449, %v1453
    %vm1455 = vweird.f32 %v1447
    %vm1456 = vweird.f32 %v1449
    %vm1457 = vmor %vm1455, %vm1456
    %v1458 = vsel %vm1457, %v1449, %v1454
    %v1459 = vrsqrt.pop %v1448
    %v1460 = vmul.f32 %v1459, %v1448
    %v1461 = vmul.f32 %v1460, %v1459
    %v1462 = vmul.f32 0.5, %v1461
    %v1463 = vsub.f32 1.5, %v1462
    %v1464 = vmul.f32 %v1459, %v1463
    %vm1465 = vweird.f32 %v1448
    %vm1466 = vweird.f32 %v1459
    %vm1467 = vmor %vm1465, %vm1466
    %v1468 = vsel %vm1467, %v1459, %v1464
    %v1469 = vmul.f32 %v1435, %v1458
    %v1470 = vmul.f32 %v1436, %v1468
    %v1472 = vperm.slane %v1424, 0
    %v1474 = vmul.f32 %v1469, %v1472
    %v1475 = vmul.f32 %v1470, %v1472
    %v1477 = vperm.slane %v1426, 0
    %v1479 = vadd.f32 %v1474, %v1477
    %v1480 = vadd.f32 %v1475, %v1477
    %v1481 = vld [vmem:[#allocation22] sm:$0xff]
    %v1482 = vld [vmem:[#allocation22 + $0x8] sm:$0xff]
    %v1483 = vld [vmem:[#allocation22 + $0x10] sm:$0xff]
    %v1484 = vld [vmem:[#allocation22 + $0x18] sm:$0xff]
    %v1485 = vld [vmem:[#allocation23] sm:$0x1]
    %v1487 = vperm.slane %v1485, 0
    %v1491 = vrot.slane %v1480, 7
    %vm1492 = vcmask 1041409
    %v1493 = vsel %vm1492, %v1491, %v1479
    %v1494 = vsel %vm288, %v1493, 0
    %1496 = vmatpush.msra.mxu0 0.0
    %1497 = vmatpush.msra.mxu0 0.0
    %1498 = vmatpush.msra.mxu0 0.0
    %1499 = vmatpush.msra.mxu0 0.0
    %1500 = vmatpush.msra.mxu0 0.0
    %1501 = vmatpush.msra.mxu0 0.0
    %1502 = vmatpush.msra.mxu0 0.0
    %1503 = vmatpush.msra.mxu0 0.0
    %1504 = vmatpush.msra.mxu0 0.0
    %1505 = vmatpush.msra.mxu0 0.0
    %1506 = vmatpush.msra.mxu0 0.0
    %1507 = vmatpush.msra.mxu0 0.0
    %1508 = vmatpush.msra.mxu0 %v1484
    %1509 = vmatpush.msra.mxu0 %v1483
    %1510 = vmatpush.msra.mxu0 %v1482
    %1511 = vmatpush.msra.mxu0 %v1481
    %1512 = vmatmul.f32.gmra.mxu0 %v1494
    %v1513 = vpop.f32.mrf.mxu0
    %v1514 = vadd.f32 %v1487, %v1513
    %1515 = vdwg.mxu0
    %v1516 = vtanh.pop %v1514
    %v1517 = vld [vmem:[%s18] sm:$0xff]
    %v1518 = vld [vmem:[%s18 + $0x8] sm:$0xff]
    %v1519 = vld [vmem:[%s18 + $0x10] sm:$0xff]
    %v1520 = vld [vmem:[%s18 + $0x18] sm:$0xff]
    %v1521 = vld [vmem:[%s19] sm:$0x1]
    %v1523 = vperm.slane %v1521, 0
    %v1526 = vsel %vm288, %v1516, 0
    %1528 = vmatpush.msra.mxu0 0.0
    %1529 = vmatpush.msra.mxu0 0.0
    %1530 = vmatpush.msra.mxu0 0.0
    %1531 = vmatpush.msra.mxu0 0.0
    %1532 = vmatpush.msra.mxu0 0.0
    %1533 = vmatpush.msra.mxu0 0.0
    %1534 = vmatpush.msra.mxu0 0.0
    %1535 = vmatpush.msra.mxu0 0.0
    %1536 = vmatpush.msra.mxu0 0.0
    %1537 = vmatpush.msra.mxu0 0.0
    %1538 = vmatpush.msra.mxu0 0.0
    %1539 = vmatpush.msra.mxu0 0.0
    %1540 = vmatpush.msra.mxu0 %v1520
    %1541 = vmatpush.msra.mxu0 %v1519
    %1542 = vmatpush.msra.mxu0 %v1518
    %1543 = vmatpush.msra.mxu0 %v1517
    %1544 = vmatmul.f32.gmra.mxu0 %v1526
    %v1545 = vpop.f32.mrf.mxu0
    %v1546 = vadd.f32 %v1523, %v1545
    %1547 = vdwg.mxu0
    %v1548 = vld [vmem:[%s20] sm:$0xff]
    %v1549 = vld [vmem:[%s20 + $0x8] sm:$0xff]
    %v1550 = vld [vmem:[%s21] sm:$0x1]
    %v1552 = vperm.slane %v1550, 0
    %v1555 = vsel %vm403, %v1546, 0
    %1557 = vmatpush.msra.mxu0 0.0
    %1558 = vmatpush.msra.mxu0 0.0
    %1559 = vmatpush.msra.mxu0 0.0
    %1560 = vmatpush.msra.mxu0 0.0
    %1561 = vmatpush.msra.mxu0 0.0
    %1562 = vmatpush.msra.mxu0 0.0
    %1563 = vmatpush.msra.mxu0 0.0
    %1564 = vmatpush.msra.mxu0 0.0
    %1565 = vmatpush.msra.mxu0 0.0
    %1566 = vmatpush.msra.mxu0 0.0
    %1567 = vmatpush.msra.mxu0 0.0
    %1568 = vmatpush.msra.mxu0 0.0
    %1569 = vmatpush.msra.mxu0 0.0
    %1570 = vmatpush.msra.mxu0 0.0
    %1571 = vmatpush.msra.mxu0 %v1549
    %1572 = vmatpush.msra.mxu0 %v1548
    %1573 = vmatmul.f32.gmra.mxu0 %v1555
    %v1574 = vpop.f32.mrf.mxu0
    %v1575 = vadd.f32 %v1552, %v1574
    %1576 = vdwg.mxu0
    %vm1577 = vcmask 9216
    %1578 = vst.msk [vmem:[#allocation25] sm:$0x3] %vm1577, %v1575
    // Predicated region
    $region146: #{tpu_custom_call.1} parent=1 // pred_check
      _
    $region147: #{tpu_custom_call.1} parent=1 // pred_check_branch
      %1580 = sbr.rel (0) target = $region149
    $region148: #{tpu_custom_call.1} parent=1 // pred_region
      %1582 = vsyncadd [#allocation4], 0
      %s1584 = sshll.u32 [#allocation25], 4
      %s1585 = int_to_ptr.vmem [resolvable:$true] %s1584
      %s1586 = sshll.u32 %s22, 4
      %s1587 = int_to_ptr.hbm [resolvable:$true] %s1586
      %1589 = dma.vmem_to_hbm [thread:$0]  %s1585, 32, %s1587, [#allocation4]
    $region149: #{tpu_custom_call.1} parent=1 // pred_fallthru
      _
    // Predicated region
    $region150: #{tpu_custom_call.1} parent=1 // pred_check
      _
    $region151: #{tpu_custom_call.1} parent=1 // pred_check_branch
      %1591 = sbr.rel (0) target = $region153
    $region152: #{tpu_custom_call.1} parent=1 // pred_region
      %1593 = dma.done [#allocation4], 32
    $region153: #{tpu_custom_call.1} parent=1 // pred_fallthru
      _
    %1594 = vsyncpa [#allocation3], 1
    %1595 = vsyncpa [#allocation6], 1
    %1596 = vsyncpa [#allocation9], 1
    %1597 = vsyncpa [#allocation12], 1
    %1598 = vsyncpa [#allocation15], 1
    %1599 = vsyncpa [#allocation18], 1
    %1600 = vsyncpa [#allocation21], 1
    %1601 = vsyncpa [#allocation24], 1
    %1602 = vsyncpa [#allocation4], 1

</llo_original>
